<compile_context>
chip_gen: v7x
topology: tpu7x:2x2x1
jax: 0.10.0
libtpu: 0.0.40
codegen_flags: <defaults>
</compile_context>

<pallas_src>
import functools

import jax
import jax.numpy as jnp
from jax.experimental import pallas as pl
from jax.experimental.pallas import tpu as pltpu


# ---------------------------------------------------------------------------
# Fused kernel: LSTM recurrence + Flatten + Linear1 + BatchNorm1d + ReLU + Linear2
# ---------------------------------------------------------------------------
def fused_forward_kernel(x_ref, wih_ref, whh_ref, b_ref,
                         w1_ref, b1_ref, gamma_ref, beta_ref,
                         w2_ref, b2_ref, out_ref, *, hidden, seq_len):
    H = hidden
    T = seq_len
    N = x_ref.shape[0]
    F = x_ref.shape[2]

    # ---- Hoisted input projection (independent of t, done once) ----------
    # (N, T, F) -> (N*T, F) is a layout no-op (minor dim unchanged); one MXU pass.
    x2 = x_ref[...].reshape(N * T, F)
    xw = (jnp.dot(x2, wih_ref[...], preferred_element_type=jnp.float32)
          + b_ref[...]).reshape(N, T, 4 * H)          # bias broadcast hoisted here too

    whh = whh_ref[...]                                # (H, 4H), loaded once

    # Lane mask selecting the tanh ("g") gate block [2H, 3H) of the packed 4H lanes.
    lane = jax.lax.broadcasted_iota(jnp.int32, (N, 4 * H), 1)
    is_g = (lane >= 2 * H) & (lane < 3 * H)

    h = jnp.zeros((N, H), jnp.float32)
    c = jnp.zeros((N, H), jnp.float32)
    acc = jnp.zeros((N, 2 * H), jnp.float32)          # Flatten + Linear1, accumulated in-loop

    # T is tiny & static -> fully unrolled recurrence; only h @ W_hh is on the
    # serial critical path (PyTorch gate order along 4H: i, f, g, o).
    for t in range(T):
        gates = xw[:, t, :] + jnp.dot(h, whh, preferred_element_type=jnp.float32)
        act = jnp.where(is_g, jnp.tanh(gates), jax.nn.sigmoid(gates))
        i_g = act[:, 0 * H:1 * H]
        f_g = act[:, 1 * H:2 * H]
        g_g = act[:, 2 * H:3 * H]
        o_g = act[:, 3 * H:4 * H]
        c = f_g * c + i_g * g_g
        h = o_g * jnp.tanh(c)
        # flat(N, T*H) @ W1(T*H, 2H)  ==  sum_t  h_t @ W1[t*H:(t+1)*H, :]
        acc = acc + jnp.dot(h, w1_ref[t * H:(t + 1) * H, :],
                            preferred_element_type=jnp.float32)

    # ---- Decoder epilogue: +b1 -> BatchNorm1d (batch stats, eps=1e-5) -> ReLU -> Linear2
    h1 = acc + b1_ref[...]
    mean = jnp.mean(h1, axis=0, keepdims=True)
    var = jnp.mean((h1 - mean) ** 2, axis=0, keepdims=True)   # biased, training-mode BN
    h1n = (h1 - mean) * jax.lax.rsqrt(var + 1e-5)
    h1n = h1n * gamma_ref[...] + beta_ref[...]
    h1r = jnp.maximum(h1n, 0.0)

    out = jnp.dot(h1r, w2_ref[...], preferred_element_type=jnp.float32) + b2_ref[...]
    out_ref[...] = out.astype(out_ref.dtype)


def complex_audio_rnn_forward(x_ntf, params, hidden):
    # x_ntf: (N, T, F), batch-first like the PyTorch module — consumed in native layout.
    N, T, F = x_ntf.shape
    H4 = 4 * hidden
    H2 = 2 * hidden
    flat_dim = T * hidden
    C = params["w2_t"].shape[1]

    kernel = functools.partial(fused_forward_kernel, hidden=hidden, seq_len=T)
    return pl.pallas_call(
        kernel,
        out_shape=jax.ShapeDtypeStruct((N, C), jnp.float32),
        grid_spec=pltpu.PrefetchScalarGridSpec(
            num_scalar_prefetch=0,
            grid=(1,),
            in_specs=[
                pl.BlockSpec((N, T, F), lambda i: (0, 0, 0)),
                pl.BlockSpec((F, H4), lambda i: (0, 0)),
                pl.BlockSpec((hidden, H4), lambda i: (0, 0)),
                pl.BlockSpec((1, H4), lambda i: (0, 0)),
                pl.BlockSpec((flat_dim, H2), lambda i: (0, 0)),
                pl.BlockSpec((1, H2), lambda i: (0, 0)),
                pl.BlockSpec((1, H2), lambda i: (0, 0)),
                pl.BlockSpec((1, H2), lambda i: (0, 0)),
                pl.BlockSpec((H2, C), lambda i: (0, 0)),
                pl.BlockSpec((1, C), lambda i: (0, 0)),
            ],
            out_specs=pl.BlockSpec((N, C), lambda i: (0, 0)),
        ),
        compiler_params=pltpu.CompilerParams(
            dimension_semantics=("arbitrary",)
        ),
    )(x_ntf, params["w_ih_t"], params["w_hh_t"], params["bias"],
      params["w1_t"], params["b1"], params["gamma"], params["beta"],
      params["w2_t"], params["b2"])


# ---------------------------------------------------------------------------
# Pure-JAX reference for correctness check.
# ---------------------------------------------------------------------------
def reference_forward(x_ntf, params, hidden):
    N, T, F = x_ntf.shape
    H = hidden

    def step(carry, x_t):
        h, c = carry
        gates = x_t @ params["w_ih_t"] + h @ params["w_hh_t"] + params["bias"]
        i = jax.nn.sigmoid(gates[:, 0 * H:1 * H])
        f = jax.nn.sigmoid(gates[:, 1 * H:2 * H])
        g = jnp.tanh(gates[:, 2 * H:3 * H])
        o = jax.nn.sigmoid(gates[:, 3 * H:4 * H])
        c = f * c + i * g
        h = o * jnp.tanh(c)
        return (h, c), h

    h0 = jnp.zeros((N, H), jnp.float32)
    c0 = jnp.zeros((N, H), jnp.float32)
    (_, _), seq = jax.lax.scan(step, (h0, c0), jnp.transpose(x_ntf, (1, 0, 2)))
    seq = jnp.transpose(seq, (1, 0, 2)).reshape(N, -1)

    h1 = seq @ params["w1_t"] + params["b1"]
    mean = jnp.mean(h1, axis=0, keepdims=True)
    var = jnp.mean((h1 - mean) ** 2, axis=0, keepdims=True)
    h1 = (h1 - mean) * jax.lax.rsqrt(var + 1e-5) * params["gamma"] + params["beta"]
    h1 = jnp.maximum(h1, 0.0)
    return h1 @ params["w2_t"] + params["b2"]


def init_params(key, feature_size, hidden, max_length, num_classes):
    ks = jax.random.split(key, 8)
    H = hidden
    flat_dim = max_length * H

    def uni(k, shape, bound):
        return jax.random.uniform(k, shape, jnp.float32, -bound, bound)

    lstm_b = 1.0 / jnp.sqrt(H)
    # Stored pre-transposed: (in, 4H) and (H, 4H); PyTorch stores (4H, in)/(4H, H).
    w_ih_t = uni(ks[0], (feature_size, 4 * H), lstm_b)
    w_hh_t = uni(ks[1], (H, 4 * H), lstm_b)
    bias = uni(ks[2], (1, 4 * H), lstm_b) + uni(ks[3], (1, 4 * H), lstm_b)  # b_ih + b_hh

    l1_b = 1.0 / jnp.sqrt(flat_dim)
    w1_t = uni(ks[4], (flat_dim, 2 * H), l1_b)
    b1 = uni(ks[5], (1, 2 * H), l1_b)
    gamma = jnp.ones((1, 2 * H), jnp.float32)
    beta = jnp.zeros((1, 2 * H), jnp.float32)
    l2_b = 1.0 / jnp.sqrt(2 * H)
    w2_t = uni(ks[6], (2 * H, num_classes), l2_b)
    b2 = uni(ks[7], (1, num_classes), l2_b)

    return dict(w_ih_t=w_ih_t, w_hh_t=w_hh_t, bias=bias,
                w1_t=w1_t, b1=b1, gamma=gamma, beta=beta, w2_t=w2_t, b2=b2)


if __name__ == "__main__":
    # config: hidden_size=32, max_length=8, num_classes=4; feature_size=68 (module default)
    FEATURE_SIZE = 68
    HIDDEN = 32
    MAX_LENGTH = 8
    NUM_CLASSES = 4
    BATCH = 2

    key = jax.random.PRNGKey(0)
    k_x, k_p = jax.random.split(key)
    x = jax.random.normal(k_x, (BATCH, MAX_LENGTH, FEATURE_SIZE), jnp.float32)
    params = init_params(k_p, FEATURE_SIZE, HIDDEN, MAX_LENGTH, NUM_CLASSES)

    out = complex_audio_rnn_forward(x, params, HIDDEN)
    out = jax.block_until_ready(out)

    ref = jax.block_until_ready(reference_forward(x, params, HIDDEN))
    assert out.shape == (BATCH, NUM_CLASSES), out.shape
    assert jnp.allclose(out, ref, atol=1e-4, rtol=1e-4), (out, ref)

    print("KERNEL_OK")
</pallas_src>

<mosaic_0001>
module attributes {stable_mosaic.version = 11 : i64} {
  func.func @fused_forward_kernel(%arg0: i32, %arg1: memref<2x8x68xf32, #tpu.memory_space<vmem>>, %arg2: memref<68x128xf32, #tpu.memory_space<vmem>>, %arg3: memref<32x128xf32, #tpu.memory_space<vmem>>, %arg4: memref<1x128xf32, #tpu.memory_space<vmem>>, %arg5: memref<256x64xf32, #tpu.memory_space<vmem>>, %arg6: memref<1x64xf32, #tpu.memory_space<vmem>>, %arg7: memref<1x64xf32, #tpu.memory_space<vmem>>, %arg8: memref<1x64xf32, #tpu.memory_space<vmem>>, %arg9: memref<64x4xf32, #tpu.memory_space<vmem>>, %arg10: memref<1x4xf32, #tpu.memory_space<vmem>>, %arg11: memref<2x4xf32, #tpu.memory_space<vmem>>) attributes {dimension_semantics = [#tpu.dimension_semantics<arbitrary>], iteration_bounds = array<i64: 1>, scalar_prefetch = 0 : i64, scratch_operands = 0 : i64, tpu.core_type = #tpu.core_type<tc>, window_params = [{pipeline_mode = #tpu.pipeline_mode<synchronous>, transform_indices = @transform_0, window_bounds = array<i64: 2, 8, 68>}, {pipeline_mode = #tpu.pipeline_mode<synchronous>, transform_indices = @transform_1, window_bounds = array<i64: 68, 128>}, {pipeline_mode = #tpu.pipeline_mode<synchronous>, transform_indices = @transform_2, window_bounds = array<i64: 32, 128>}, {pipeline_mode = #tpu.pipeline_mode<synchronous>, transform_indices = @transform_3, window_bounds = array<i64: 1, 128>}, {pipeline_mode = #tpu.pipeline_mode<synchronous>, transform_indices = @transform_4, window_bounds = array<i64: 256, 64>}, {pipeline_mode = #tpu.pipeline_mode<synchronous>, transform_indices = @transform_5, window_bounds = array<i64: 1, 64>}, {pipeline_mode = #tpu.pipeline_mode<synchronous>, transform_indices = @transform_6, window_bounds = array<i64: 1, 64>}, {pipeline_mode = #tpu.pipeline_mode<synchronous>, transform_indices = @transform_7, window_bounds = array<i64: 1, 64>}, {pipeline_mode = #tpu.pipeline_mode<synchronous>, transform_indices = @transform_8, window_bounds = array<i64: 64, 4>}, {pipeline_mode = #tpu.pipeline_mode<synchronous>, transform_indices = @transform_9, window_bounds = array<i64: 1, 4>}, {pipeline_mode = #tpu.pipeline_mode<synchronous>, transform_indices = @transform_10, window_bounds = array<i64: 2, 4>}]} {
    %c0 = arith.constant 0 : index
    %c0_0 = arith.constant 0 : index
    %c0_1 = arith.constant 0 : index
    %0 = vector.load %arg1[%c0, %c0_0, %c0_1] : memref<2x8x68xf32, #tpu.memory_space<vmem>>, vector<2x8x68xf32>
    %1 = vector.shape_cast %0 : vector<2x8x68xf32> to vector<16x68xf32>
    %c0_2 = arith.constant 0 : index
    %c0_3 = arith.constant 0 : index
    %2 = vector.load %arg2[%c0_2, %c0_3] : memref<68x128xf32, #tpu.memory_space<vmem>>, vector<68x128xf32>
    %cst = arith.constant dense<0.000000e+00> : vector<16x128xf32>
    %3 = tpu.matmul %1, %2, %cst {dimension_numbers = #tpu.dot_dimension_numbers<[1], [0], [0], [1], [0, 0, 1, 1], [], []>} : vector<16x68xf32>, vector<68x128xf32>, vector<16x128xf32> -> vector<16x128xf32>
    %c0_4 = arith.constant 0 : index
    %c0_5 = arith.constant 0 : index
    %4 = vector.load %arg4[%c0_4, %c0_5] : memref<1x128xf32, #tpu.memory_space<vmem>>, vector<1x128xf32>
    %5 = vector.broadcast %4 : vector<1x128xf32> to vector<16x128xf32>
    %6 = arith.addf %3, %5 : vector<16x128xf32>
    %7 = vector.shape_cast %6 : vector<16x128xf32> to vector<2x8x128xf32>
    %c0_6 = arith.constant 0 : index
    %c0_7 = arith.constant 0 : index
    %8 = vector.load %arg3[%c0_6, %c0_7] : memref<32x128xf32, #tpu.memory_space<vmem>>, vector<32x128xf32>
    %9 = tpu.iota {dimensions = array<i32: 1>} : vector<2x128xi32>
    %c64_i32 = arith.constant 64 : i32
    %10 = vector.broadcast %c64_i32 : i32 to vector<2x128xi32>
    %11 = arith.cmpi sge, %9, %10 : vector<2x128xi32>
    %c96_i32 = arith.constant 96 : i32
    %12 = vector.broadcast %c96_i32 : i32 to vector<2x128xi32>
    %13 = arith.cmpi slt, %9, %12 : vector<2x128xi32>
    %14 = arith.andi %11, %13 : vector<2x128xi1>
    %cst_8 = arith.constant 0.000000e+00 : f32
    %15 = vector.broadcast %cst_8 : f32 to vector<2x32xf32>
    %cst_9 = arith.constant 0.000000e+00 : f32
    %16 = vector.broadcast %cst_9 : f32 to vector<2x32xf32>
    %cst_10 = arith.constant 0.000000e+00 : f32
    %17 = vector.broadcast %cst_10 : f32 to vector<2x64xf32>
    %18 = vector.extract_strided_slice %7 {offsets = [0, 0, 0], sizes = [2, 1, 128], strides = [1, 1, 1]} : vector<2x8x128xf32> to vector<2x1x128xf32>
    %19 = vector.shape_cast %18 : vector<2x1x128xf32> to vector<2x128xf32>
    %cst_11 = arith.constant dense<0.000000e+00> : vector<2x128xf32>
    %20 = tpu.matmul %15, %8, %cst_11 {dimension_numbers = #tpu.dot_dimension_numbers<[1], [0], [0], [1], [0, 0, 1, 1], [], []>} : vector<2x32xf32>, vector<32x128xf32>, vector<2x128xf32> -> vector<2x128xf32>
    %21 = arith.addf %19, %20 : vector<2x128xf32>
    %22 = math.tanh %21 : vector<2x128xf32>
    %23 = arith.negf %21 : vector<2x128xf32>
    %24 = math.exp %23 : vector<2x128xf32>
    %cst_12 = arith.constant 1.000000e+00 : f32
    %25 = vector.broadcast %cst_12 : f32 to vector<2x128xf32>
    %26 = arith.addf %25, %24 : vector<2x128xf32>
    %27 = arith.divf %25, %26 : vector<2x128xf32>
    %28 = arith.select %14, %22, %27 : vector<2x128xi1>, vector<2x128xf32>
    %29 = vector.extract_strided_slice %28 {offsets = [0, 0], sizes = [2, 32], strides = [1, 1]} : vector<2x128xf32> to vector<2x32xf32>
    %30 = vector.extract_strided_slice %28 {offsets = [0, 32], sizes = [2, 32], strides = [1, 1]} : vector<2x128xf32> to vector<2x32xf32>
    %31 = vector.extract_strided_slice %28 {offsets = [0, 64], sizes = [2, 32], strides = [1, 1]} : vector<2x128xf32> to vector<2x32xf32>
    %32 = vector.extract_strided_slice %28 {offsets = [0, 96], sizes = [2, 32], strides = [1, 1]} : vector<2x128xf32> to vector<2x32xf32>
    %33 = arith.mulf %30, %16 : vector<2x32xf32>
    %34 = arith.mulf %29, %31 : vector<2x32xf32>
    %35 = arith.addf %33, %34 : vector<2x32xf32>
    %36 = math.tanh %35 : vector<2x32xf32>
    %37 = arith.mulf %32, %36 : vector<2x32xf32>
    %c0_13 = arith.constant 0 : index
    %c0_14 = arith.constant 0 : index
    %38 = vector.load %arg5[%c0_13, %c0_14] : memref<256x64xf32, #tpu.memory_space<vmem>>, vector<32x64xf32>
    %cst_15 = arith.constant dense<0.000000e+00> : vector<2x64xf32>
    %39 = tpu.matmul %37, %38, %cst_15 {dimension_numbers = #tpu.dot_dimension_numbers<[1], [0], [0], [1], [0, 0, 1, 1], [], []>} : vector<2x32xf32>, vector<32x64xf32>, vector<2x64xf32> -> vector<2x64xf32>
    %40 = arith.addf %17, %39 : vector<2x64xf32>
    %41 = vector.extract_strided_slice %7 {offsets = [0, 1, 0], sizes = [2, 1, 128], strides = [1, 1, 1]} : vector<2x8x128xf32> to vector<2x1x128xf32>
    %42 = vector.shape_cast %41 : vector<2x1x128xf32> to vector<2x128xf32>
    %cst_16 = arith.constant dense<0.000000e+00> : vector<2x128xf32>
    %43 = tpu.matmul %37, %8, %cst_16 {dimension_numbers = #tpu.dot_dimension_numbers<[1], [0], [0], [1], [0, 0, 1, 1], [], []>} : vector<2x32xf32>, vector<32x128xf32>, vector<2x128xf32> -> vector<2x128xf32>
    %44 = arith.addf %42, %43 : vector<2x128xf32>
    %45 = math.tanh %44 : vector<2x128xf32>
    %46 = arith.negf %44 : vector<2x128xf32>
    %47 = math.exp %46 : vector<2x128xf32>
    %cst_17 = arith.constant 1.000000e+00 : f32
    %48 = vector.broadcast %cst_17 : f32 to vector<2x128xf32>
    %49 = arith.addf %48, %47 : vector<2x128xf32>
    %50 = arith.divf %48, %49 : vector<2x128xf32>
    %51 = arith.select %14, %45, %50 : vector<2x128xi1>, vector<2x128xf32>
    %52 = vector.extract_strided_slice %51 {offsets = [0, 0], sizes = [2, 32], strides = [1, 1]} : vector<2x128xf32> to vector<2x32xf32>
    %53 = vector.extract_strided_slice %51 {offsets = [0, 32], sizes = [2, 32], strides = [1, 1]} : vector<2x128xf32> to vector<2x32xf32>
    %54 = vector.extract_strided_slice %51 {offsets = [0, 64], sizes = [2, 32], strides = [1, 1]} : vector<2x128xf32> to vector<2x32xf32>
    %55 = vector.extract_strided_slice %51 {offsets = [0, 96], sizes = [2, 32], strides = [1, 1]} : vector<2x128xf32> to vector<2x32xf32>
    %56 = arith.mulf %53, %35 : vector<2x32xf32>
    %57 = arith.mulf %52, %54 : vector<2x32xf32>
    %58 = arith.addf %56, %57 : vector<2x32xf32>
    %59 = math.tanh %58 : vector<2x32xf32>
    %60 = arith.mulf %55, %59 : vector<2x32xf32>
    %c32 = arith.constant 32 : index
    %c0_18 = arith.constant 0 : index
    %61 = vector.load %arg5[%c32, %c0_18] : memref<256x64xf32, #tpu.memory_space<vmem>>, vector<32x64xf32>
    %cst_19 = arith.constant dense<0.000000e+00> : vector<2x64xf32>
    %62 = tpu.matmul %60, %61, %cst_19 {dimension_numbers = #tpu.dot_dimension_numbers<[1], [0], [0], [1], [0, 0, 1, 1], [], []>} : vector<2x32xf32>, vector<32x64xf32>, vector<2x64xf32> -> vector<2x64xf32>
    %63 = arith.addf %40, %62 : vector<2x64xf32>
    %64 = vector.extract_strided_slice %7 {offsets = [0, 2, 0], sizes = [2, 1, 128], strides = [1, 1, 1]} : vector<2x8x128xf32> to vector<2x1x128xf32>
    %65 = vector.shape_cast %64 : vector<2x1x128xf32> to vector<2x128xf32>
    %cst_20 = arith.constant dense<0.000000e+00> : vector<2x128xf32>
    %66 = tpu.matmul %60, %8, %cst_20 {dimension_numbers = #tpu.dot_dimension_numbers<[1], [0], [0], [1], [0, 0, 1, 1], [], []>} : vector<2x32xf32>, vector<32x128xf32>, vector<2x128xf32> -> vector<2x128xf32>
    %67 = arith.addf %65, %66 : vector<2x128xf32>
    %68 = math.tanh %67 : vector<2x128xf32>
    %69 = arith.negf %67 : vector<2x128xf32>
    %70 = math.exp %69 : vector<2x128xf32>
    %cst_21 = arith.constant 1.000000e+00 : f32
    %71 = vector.broadcast %cst_21 : f32 to vector<2x128xf32>
    %72 = arith.addf %71, %70 : vector<2x128xf32>
    %73 = arith.divf %71, %72 : vector<2x128xf32>
    %74 = arith.select %14, %68, %73 : vector<2x128xi1>, vector<2x128xf32>
    %75 = vector.extract_strided_slice %74 {offsets = [0, 0], sizes = [2, 32], strides = [1, 1]} : vector<2x128xf32> to vector<2x32xf32>
    %76 = vector.extract_strided_slice %74 {offsets = [0, 32], sizes = [2, 32], strides = [1, 1]} : vector<2x128xf32> to vector<2x32xf32>
    %77 = vector.extract_strided_slice %74 {offsets = [0, 64], sizes = [2, 32], strides = [1, 1]} : vector<2x128xf32> to vector<2x32xf32>
    %78 = vector.extract_strided_slice %74 {offsets = [0, 96], sizes = [2, 32], strides = [1, 1]} : vector<2x128xf32> to vector<2x32xf32>
    %79 = arith.mulf %76, %58 : vector<2x32xf32>
    %80 = arith.mulf %75, %77 : vector<2x32xf32>
    %81 = arith.addf %79, %80 : vector<2x32xf32>
    %82 = math.tanh %81 : vector<2x32xf32>
    %83 = arith.mulf %78, %82 : vector<2x32xf32>
    %c64 = arith.constant 64 : index
    %c0_22 = arith.constant 0 : index
    %84 = vector.load %arg5[%c64, %c0_22] : memref<256x64xf32, #tpu.memory_space<vmem>>, vector<32x64xf32>
    %cst_23 = arith.constant dense<0.000000e+00> : vector<2x64xf32>
    %85 = tpu.matmul %83, %84, %cst_23 {dimension_numbers = #tpu.dot_dimension_numbers<[1], [0], [0], [1], [0, 0, 1, 1], [], []>} : vector<2x32xf32>, vector<32x64xf32>, vector<2x64xf32> -> vector<2x64xf32>
    %86 = arith.addf %63, %85 : vector<2x64xf32>
    %87 = vector.extract_strided_slice %7 {offsets = [0, 3, 0], sizes = [2, 1, 128], strides = [1, 1, 1]} : vector<2x8x128xf32> to vector<2x1x128xf32>
    %88 = vector.shape_cast %87 : vector<2x1x128xf32> to vector<2x128xf32>
    %cst_24 = arith.constant dense<0.000000e+00> : vector<2x128xf32>
    %89 = tpu.matmul %83, %8, %cst_24 {dimension_numbers = #tpu.dot_dimension_numbers<[1], [0], [0], [1], [0, 0, 1, 1], [], []>} : vector<2x32xf32>, vector<32x128xf32>, vector<2x128xf32> -> vector<2x128xf32>
    %90 = arith.addf %88, %89 : vector<2x128xf32>
    %91 = math.tanh %90 : vector<2x128xf32>
    %92 = arith.negf %90 : vector<2x128xf32>
    %93 = math.exp %92 : vector<2x128xf32>
    %cst_25 = arith.constant 1.000000e+00 : f32
    %94 = vector.broadcast %cst_25 : f32 to vector<2x128xf32>
    %95 = arith.addf %94, %93 : vector<2x128xf32>
    %96 = arith.divf %94, %95 : vector<2x128xf32>
    %97 = arith.select %14, %91, %96 : vector<2x128xi1>, vector<2x128xf32>
    %98 = vector.extract_strided_slice %97 {offsets = [0, 0], sizes = [2, 32], strides = [1, 1]} : vector<2x128xf32> to vector<2x32xf32>
    %99 = vector.extract_strided_slice %97 {offsets = [0, 32], sizes = [2, 32], strides = [1, 1]} : vector<2x128xf32> to vector<2x32xf32>
    %100 = vector.extract_strided_slice %97 {offsets = [0, 64], sizes = [2, 32], strides = [1, 1]} : vector<2x128xf32> to vector<2x32xf32>
    %101 = vector.extract_strided_slice %97 {offsets = [0, 96], sizes = [2, 32], strides = [1, 1]} : vector<2x128xf32> to vector<2x32xf32>
    %102 = arith.mulf %99, %81 : vector<2x32xf32>
    %103 = arith.mulf %98, %100 : vector<2x32xf32>
    %104 = arith.addf %102, %103 : vector<2x32xf32>
    %105 = math.tanh %104 : vector<2x32xf32>
    %106 = arith.mulf %101, %105 : vector<2x32xf32>
    %c96 = arith.constant 96 : index
    %c0_26 = arith.constant 0 : index
    %107 = vector.load %arg5[%c96, %c0_26] : memref<256x64xf32, #tpu.memory_space<vmem>>, vector<32x64xf32>
    %cst_27 = arith.constant dense<0.000000e+00> : vector<2x64xf32>
    %108 = tpu.matmul %106, %107, %cst_27 {dimension_numbers = #tpu.dot_dimension_numbers<[1], [0], [0], [1], [0, 0, 1, 1], [], []>} : vector<2x32xf32>, vector<32x64xf32>, vector<2x64xf32> -> vector<2x64xf32>
    %109 = arith.addf %86, %108 : vector<2x64xf32>
    %110 = vector.extract_strided_slice %7 {offsets = [0, 4, 0], sizes = [2, 1, 128], strides = [1, 1, 1]} : vector<2x8x128xf32> to vector<2x1x128xf32>
    %111 = vector.shape_cast %110 : vector<2x1x128xf32> to vector<2x128xf32>
    %cst_28 = arith.constant dense<0.000000e+00> : vector<2x128xf32>
    %112 = tpu.matmul %106, %8, %cst_28 {dimension_numbers = #tpu.dot_dimension_numbers<[1], [0], [0], [1], [0, 0, 1, 1], [], []>} : vector<2x32xf32>, vector<32x128xf32>, vector<2x128xf32> -> vector<2x128xf32>
    %113 = arith.addf %111, %112 : vector<2x128xf32>
    %114 = math.tanh %113 : vector<2x128xf32>
    %115 = arith.negf %113 : vector<2x128xf32>
    %116 = math.exp %115 : vector<2x128xf32>
    %cst_29 = arith.constant 1.000000e+00 : f32
    %117 = vector.broadcast %cst_29 : f32 to vector<2x128xf32>
    %118 = arith.addf %117, %116 : vector<2x128xf32>
    %119 = arith.divf %117, %118 : vector<2x128xf32>
    %120 = arith.select %14, %114, %119 : vector<2x128xi1>, vector<2x128xf32>
    %121 = vector.extract_strided_slice %120 {offsets = [0, 0], sizes = [2, 32], strides = [1, 1]} : vector<2x128xf32> to vector<2x32xf32>
    %122 = vector.extract_strided_slice %120 {offsets = [0, 32], sizes = [2, 32], strides = [1, 1]} : vector<2x128xf32> to vector<2x32xf32>
    %123 = vector.extract_strided_slice %120 {offsets = [0, 64], sizes = [2, 32], strides = [1, 1]} : vector<2x128xf32> to vector<2x32xf32>
    %124 = vector.extract_strided_slice %120 {offsets = [0, 96], sizes = [2, 32], strides = [1, 1]} : vector<2x128xf32> to vector<2x32xf32>
    %125 = arith.mulf %122, %104 : vector<2x32xf32>
    %126 = arith.mulf %121, %123 : vector<2x32xf32>
    %127 = arith.addf %125, %126 : vector<2x32xf32>
    %128 = math.tanh %127 : vector<2x32xf32>
    %129 = arith.mulf %124, %128 : vector<2x32xf32>
    %c128 = arith.constant 128 : index
    %c0_30 = arith.constant 0 : index
    %130 = vector.load %arg5[%c128, %c0_30] : memref<256x64xf32, #tpu.memory_space<vmem>>, vector<32x64xf32>
    %cst_31 = arith.constant dense<0.000000e+00> : vector<2x64xf32>
    %131 = tpu.matmul %129, %130, %cst_31 {dimension_numbers = #tpu.dot_dimension_numbers<[1], [0], [0], [1], [0, 0, 1, 1], [], []>} : vector<2x32xf32>, vector<32x64xf32>, vector<2x64xf32> -> vector<2x64xf32>
    %132 = arith.addf %109, %131 : vector<2x64xf32>
    %133 = vector.extract_strided_slice %7 {offsets = [0, 5, 0], sizes = [2, 1, 128], strides = [1, 1, 1]} : vector<2x8x128xf32> to vector<2x1x128xf32>
    %134 = vector.shape_cast %133 : vector<2x1x128xf32> to vector<2x128xf32>
    %cst_32 = arith.constant dense<0.000000e+00> : vector<2x128xf32>
    %135 = tpu.matmul %129, %8, %cst_32 {dimension_numbers = #tpu.dot_dimension_numbers<[1], [0], [0], [1], [0, 0, 1, 1], [], []>} : vector<2x32xf32>, vector<32x128xf32>, vector<2x128xf32> -> vector<2x128xf32>
    %136 = arith.addf %134, %135 : vector<2x128xf32>
    %137 = math.tanh %136 : vector<2x128xf32>
    %138 = arith.negf %136 : vector<2x128xf32>
    %139 = math.exp %138 : vector<2x128xf32>
    %cst_33 = arith.constant 1.000000e+00 : f32
    %140 = vector.broadcast %cst_33 : f32 to vector<2x128xf32>
    %141 = arith.addf %140, %139 : vector<2x128xf32>
    %142 = arith.divf %140, %141 : vector<2x128xf32>
    %143 = arith.select %14, %137, %142 : vector<2x128xi1>, vector<2x128xf32>
    %144 = vector.extract_strided_slice %143 {offsets = [0, 0], sizes = [2, 32], strides = [1, 1]} : vector<2x128xf32> to vector<2x32xf32>
    %145 = vector.extract_strided_slice %143 {offsets = [0, 32], sizes = [2, 32], strides = [1, 1]} : vector<2x128xf32> to vector<2x32xf32>
    %146 = vector.extract_strided_slice %143 {offsets = [0, 64], sizes = [2, 32], strides = [1, 1]} : vector<2x128xf32> to vector<2x32xf32>
    %147 = vector.extract_strided_slice %143 {offsets = [0, 96], sizes = [2, 32], strides = [1, 1]} : vector<2x128xf32> to vector<2x32xf32>
    %148 = arith.mulf %145, %127 : vector<2x32xf32>
    %149 = arith.mulf %144, %146 : vector<2x32xf32>
    %150 = arith.addf %148, %149 : vector<2x32xf32>
    %151 = math.tanh %150 : vector<2x32xf32>
    %152 = arith.mulf %147, %151 : vector<2x32xf32>
    %c160 = arith.constant 160 : index
    %c0_34 = arith.constant 0 : index
    %153 = vector.load %arg5[%c160, %c0_34] : memref<256x64xf32, #tpu.memory_space<vmem>>, vector<32x64xf32>
    %cst_35 = arith.constant dense<0.000000e+00> : vector<2x64xf32>
    %154 = tpu.matmul %152, %153, %cst_35 {dimension_numbers = #tpu.dot_dimension_numbers<[1], [0], [0], [1], [0, 0, 1, 1], [], []>} : vector<2x32xf32>, vector<32x64xf32>, vector<2x64xf32> -> vector<2x64xf32>
    %155 = arith.addf %132, %154 : vector<2x64xf32>
    %156 = vector.extract_strided_slice %7 {offsets = [0, 6, 0], sizes = [2, 1, 128], strides = [1, 1, 1]} : vector<2x8x128xf32> to vector<2x1x128xf32>
    %157 = vector.shape_cast %156 : vector<2x1x128xf32> to vector<2x128xf32>
    %cst_36 = arith.constant dense<0.000000e+00> : vector<2x128xf32>
    %158 = tpu.matmul %152, %8, %cst_36 {dimension_numbers = #tpu.dot_dimension_numbers<[1], [0], [0], [1], [0, 0, 1, 1], [], []>} : vector<2x32xf32>, vector<32x128xf32>, vector<2x128xf32> -> vector<2x128xf32>
    %159 = arith.addf %157, %158 : vector<2x128xf32>
    %160 = math.tanh %159 : vector<2x128xf32>
    %161 = arith.negf %159 : vector<2x128xf32>
    %162 = math.exp %161 : vector<2x128xf32>
    %cst_37 = arith.constant 1.000000e+00 : f32
    %163 = vector.broadcast %cst_37 : f32 to vector<2x128xf32>
    %164 = arith.addf %163, %162 : vector<2x128xf32>
    %165 = arith.divf %163, %164 : vector<2x128xf32>
    %166 = arith.select %14, %160, %165 : vector<2x128xi1>, vector<2x128xf32>
    %167 = vector.extract_strided_slice %166 {offsets = [0, 0], sizes = [2, 32], strides = [1, 1]} : vector<2x128xf32> to vector<2x32xf32>
    %168 = vector.extract_strided_slice %166 {offsets = [0, 32], sizes = [2, 32], strides = [1, 1]} : vector<2x128xf32> to vector<2x32xf32>
    %169 = vector.extract_strided_slice %166 {offsets = [0, 64], sizes = [2, 32], strides = [1, 1]} : vector<2x128xf32> to vector<2x32xf32>
    %170 = vector.extract_strided_slice %166 {offsets = [0, 96], sizes = [2, 32], strides = [1, 1]} : vector<2x128xf32> to vector<2x32xf32>
    %171 = arith.mulf %168, %150 : vector<2x32xf32>
    %172 = arith.mulf %167, %169 : vector<2x32xf32>
    %173 = arith.addf %171, %172 : vector<2x32xf32>
    %174 = math.tanh %173 : vector<2x32xf32>
    %175 = arith.mulf %170, %174 : vector<2x32xf32>
    %c192 = arith.constant 192 : index
    %c0_38 = arith.constant 0 : index
    %176 = vector.load %arg5[%c192, %c0_38] : memref<256x64xf32, #tpu.memory_space<vmem>>, vector<32x64xf32>
    %cst_39 = arith.constant dense<0.000000e+00> : vector<2x64xf32>
    %177 = tpu.matmul %175, %176, %cst_39 {dimension_numbers = #tpu.dot_dimension_numbers<[1], [0], [0], [1], [0, 0, 1, 1], [], []>} : vector<2x32xf32>, vector<32x64xf32>, vector<2x64xf32> -> vector<2x64xf32>
    %178 = arith.addf %155, %177 : vector<2x64xf32>
    %179 = vector.extract_strided_slice %7 {offsets = [0, 7, 0], sizes = [2, 1, 128], strides = [1, 1, 1]} : vector<2x8x128xf32> to vector<2x1x128xf32>
    %180 = vector.shape_cast %179 : vector<2x1x128xf32> to vector<2x128xf32>
    %cst_40 = arith.constant dense<0.000000e+00> : vector<2x128xf32>
    %181 = tpu.matmul %175, %8, %cst_40 {dimension_numbers = #tpu.dot_dimension_numbers<[1], [0], [0], [1], [0, 0, 1, 1], [], []>} : vector<2x32xf32>, vector<32x128xf32>, vector<2x128xf32> -> vector<2x128xf32>
    %182 = arith.addf %180, %181 : vector<2x128xf32>
    %183 = math.tanh %182 : vector<2x128xf32>
    %184 = arith.negf %182 : vector<2x128xf32>
    %185 = math.exp %184 : vector<2x128xf32>
    %cst_41 = arith.constant 1.000000e+00 : f32
    %186 = vector.broadcast %cst_41 : f32 to vector<2x128xf32>
    %187 = arith.addf %186, %185 : vector<2x128xf32>
    %188 = arith.divf %186, %187 : vector<2x128xf32>
    %189 = arith.select %14, %183, %188 : vector<2x128xi1>, vector<2x128xf32>
    %190 = vector.extract_strided_slice %189 {offsets = [0, 0], sizes = [2, 32], strides = [1, 1]} : vector<2x128xf32> to vector<2x32xf32>
    %191 = vector.extract_strided_slice %189 {offsets = [0, 32], sizes = [2, 32], strides = [1, 1]} : vector<2x128xf32> to vector<2x32xf32>
    %192 = vector.extract_strided_slice %189 {offsets = [0, 64], sizes = [2, 32], strides = [1, 1]} : vector<2x128xf32> to vector<2x32xf32>
    %193 = vector.extract_strided_slice %189 {offsets = [0, 96], sizes = [2, 32], strides = [1, 1]} : vector<2x128xf32> to vector<2x32xf32>
    %194 = arith.mulf %191, %173 : vector<2x32xf32>
    %195 = arith.mulf %190, %192 : vector<2x32xf32>
    %196 = arith.addf %194, %195 : vector<2x32xf32>
    %197 = math.tanh %196 : vector<2x32xf32>
    %198 = arith.mulf %193, %197 : vector<2x32xf32>
    %c224 = arith.constant 224 : index
    %c0_42 = arith.constant 0 : index
    %199 = vector.load %arg5[%c224, %c0_42] : memref<256x64xf32, #tpu.memory_space<vmem>>, vector<32x64xf32>
    %cst_43 = arith.constant dense<0.000000e+00> : vector<2x64xf32>
    %200 = tpu.matmul %198, %199, %cst_43 {dimension_numbers = #tpu.dot_dimension_numbers<[1], [0], [0], [1], [0, 0, 1, 1], [], []>} : vector<2x32xf32>, vector<32x64xf32>, vector<2x64xf32> -> vector<2x64xf32>
    %201 = arith.addf %178, %200 : vector<2x64xf32>
    %c0_44 = arith.constant 0 : index
    %c0_45 = arith.constant 0 : index
    %202 = vector.load %arg6[%c0_44, %c0_45] : memref<1x64xf32, #tpu.memory_space<vmem>>, vector<1x64xf32>
    %203 = vector.broadcast %202 : vector<1x64xf32> to vector<2x64xf32>
    %204 = arith.addf %201, %203 : vector<2x64xf32>
    %cst_46 = arith.constant dense<0.000000e+00> : vector<64xf32>
    %205 = vector.multi_reduction <add>, %204, %cst_46 [0] : vector<2x64xf32> to vector<64xf32>
    %206 = vector.shape_cast %205 : vector<64xf32> to vector<1x64xf32>
    %cst_47 = arith.constant 2.000000e+00 : f32
    %207 = vector.broadcast %cst_47 : f32 to vector<1x64xf32>
    %208 = arith.divf %206, %207 : vector<1x64xf32>
    %209 = vector.broadcast %208 : vector<1x64xf32> to vector<2x64xf32>
    %210 = arith.subf %204, %209 : vector<2x64xf32>
    %211 = arith.mulf %210, %210 : vector<2x64xf32>
    %cst_48 = arith.constant dense<0.000000e+00> : vector<64xf32>
    %212 = vector.multi_reduction <add>, %211, %cst_48 [0] : vector<2x64xf32> to vector<64xf32>
    %213 = vector.shape_cast %212 : vector<64xf32> to vector<1x64xf32>
    %cst_49 = arith.constant 2.000000e+00 : f32
    %214 = vector.broadcast %cst_49 : f32 to vector<1x64xf32>
    %215 = arith.divf %213, %214 : vector<1x64xf32>
    %216 = vector.broadcast %208 : vector<1x64xf32> to vector<2x64xf32>
    %217 = arith.subf %204, %216 : vector<2x64xf32>
    %cst_50 = arith.constant 9.99999974E-6 : f32
    %218 = vector.broadcast %cst_50 : f32 to vector<1x64xf32>
    %219 = arith.addf %215, %218 : vector<1x64xf32>
    %220 = math.rsqrt %219 : vector<1x64xf32>
    %221 = vector.broadcast %220 : vector<1x64xf32> to vector<2x64xf32>
    %222 = arith.mulf %217, %221 : vector<2x64xf32>
    %c0_51 = arith.constant 0 : index
    %c0_52 = arith.constant 0 : index
    %223 = vector.load %arg7[%c0_51, %c0_52] : memref<1x64xf32, #tpu.memory_space<vmem>>, vector<1x64xf32>
    %224 = vector.broadcast %223 : vector<1x64xf32> to vector<2x64xf32>
    %225 = arith.mulf %222, %224 : vector<2x64xf32>
    %c0_53 = arith.constant 0 : index
    %c0_54 = arith.constant 0 : index
    %226 = vector.load %arg8[%c0_53, %c0_54] : memref<1x64xf32, #tpu.memory_space<vmem>>, vector<1x64xf32>
    %227 = vector.broadcast %226 : vector<1x64xf32> to vector<2x64xf32>
    %228 = arith.addf %225, %227 : vector<2x64xf32>
    %cst_55 = arith.constant 0.000000e+00 : f32
    %229 = vector.broadcast %cst_55 : f32 to vector<2x64xf32>
    %230 = arith.maximumf %228, %229 : vector<2x64xf32>
    %c0_56 = arith.constant 0 : index
    %c0_57 = arith.constant 0 : index
    %231 = vector.load %arg9[%c0_56, %c0_57] : memref<64x4xf32, #tpu.memory_space<vmem>>, vector<64x4xf32>
    %cst_58 = arith.constant dense<0.000000e+00> : vector<2x4xf32>
    %232 = tpu.matmul %230, %231, %cst_58 {dimension_numbers = #tpu.dot_dimension_numbers<[1], [0], [0], [1], [0, 0, 1, 1], [], []>} : vector<2x64xf32>, vector<64x4xf32>, vector<2x4xf32> -> vector<2x4xf32>
    %c0_59 = arith.constant 0 : index
    %c0_60 = arith.constant 0 : index
    %233 = vector.load %arg10[%c0_59, %c0_60] : memref<1x4xf32, #tpu.memory_space<vmem>>, vector<1x4xf32>
    %234 = vector.broadcast %233 : vector<1x4xf32> to vector<2x4xf32>
    %235 = arith.addf %232, %234 : vector<2x4xf32>
    %c0_61 = arith.constant 0 : index
    %c0_62 = arith.constant 0 : index
    %236 = vector.load %arg11[%c0_61, %c0_62] : memref<2x4xf32, #tpu.memory_space<vmem>>, vector<2x4xf32>
    tpu.vector_store %arg11[%c0_61, %c0_62], %235 {strides = array<i32>} : memref<2x4xf32, #tpu.memory_space<vmem>>, vector<2x4xf32>,
    return
  }
  func.func @transform_0(%arg0: i32) -> (i32, i32, i32) {
    %c0_i32 = arith.constant 0 : i32
    %c0_i32_0 = arith.constant 0 : i32
    %c0_i32_1 = arith.constant 0 : i32
    %c0_i32_2 = arith.constant 0 : i32
    return %c0_i32, %c0_i32_0, %c0_i32_1 : i32, i32, i32
  }
  func.func @transform_1(%arg0: i32) -> (i32, i32) {
    %c0_i32 = arith.constant 0 : i32
    %c0_i32_0 = arith.constant 0 : i32
    %c0_i32_1 = arith.constant 0 : i32
    return %c0_i32, %c0_i32_0 : i32, i32
  }
  func.func @transform_2(%arg0: i32) -> (i32, i32) {
    %c0_i32 = arith.constant 0 : i32
    %c0_i32_0 = arith.constant 0 : i32
    %c0_i32_1 = arith.constant 0 : i32
    return %c0_i32, %c0_i32_0 : i32, i32
  }
  func.func @transform_3(%arg0: i32) -> (i32, i32) {
    %c0_i32 = arith.constant 0 : i32
    %c0_i32_0 = arith.constant 0 : i32
    %c0_i32_1 = arith.constant 0 : i32
    return %c0_i32, %c0_i32_0 : i32, i32
  }
  func.func @transform_4(%arg0: i32) -> (i32, i32) {
    %c0_i32 = arith.constant 0 : i32
    %c0_i32_0 = arith.constant 0 : i32
    %c0_i32_1 = arith.constant 0 : i32
    return %c0_i32, %c0_i32_0 : i32, i32
  }
  func.func @transform_5(%arg0: i32) -> (i32, i32) {
    %c0_i32 = arith.constant 0 : i32
    %c0_i32_0 = arith.constant 0 : i32
    %c0_i32_1 = arith.constant 0 : i32
    return %c0_i32, %c0_i32_0 : i32, i32
  }
  func.func @transform_6(%arg0: i32) -> (i32, i32) {
    %c0_i32 = arith.constant 0 : i32
    %c0_i32_0 = arith.constant 0 : i32
    %c0_i32_1 = arith.constant 0 : i32
    return %c0_i32, %c0_i32_0 : i32, i32
  }
  func.func @transform_7(%arg0: i32) -> (i32, i32) {
    %c0_i32 = arith.constant 0 : i32
    %c0_i32_0 = arith.constant 0 : i32
    %c0_i32_1 = arith.constant 0 : i32
    return %c0_i32, %c0_i32_0 : i32, i32
  }
  func.func @transform_8(%arg0: i32) -> (i32, i32) {
    %c0_i32 = arith.constant 0 : i32
    %c0_i32_0 = arith.constant 0 : i32
    %c0_i32_1 = arith.constant 0 : i32
    return %c0_i32, %c0_i32_0 : i32, i32
  }
  func.func @transform_9(%arg0: i32) -> (i32, i32) {
    %c0_i32 = arith.constant 0 : i32
    %c0_i32_0 = arith.constant 0 : i32
    %c0_i32_1 = arith.constant 0 : i32
    return %c0_i32, %c0_i32_0 : i32, i32
  }
  func.func @transform_10(%arg0: i32) -> (i32, i32) {
    %c0_i32 = arith.constant 0 : i32
    %c0_i32_0 = arith.constant 0 : i32
    %c0_i32_1 = arith.constant 0 : i32
    return %c0_i32, %c0_i32_0 : i32, i32
  }
}

</mosaic_0001>

<llo_original>
// kernel: tpu_custom_call.1
$region0: #{tpu_custom_call.1}
  #allocation0 [shape = 'u32[]', space=smem, size = 0x4, offset = 0x4, fixed_abs, tag = 'smem constant byte address 0x4 - core index']
  #allocation1 [shape = 'u32[144,128]{1,0:T(1,128)}', space=vmem, size = 0x12000, scoped, tag = 'internal scratch']
  %s0 = inlined_call_operand.vmem [shape: f32[2,8,68], index: 0, kind: input, shape index: {}]
  %s1 = inlined_call_operand.vmem [shape: f32[68,128], index: 1, kind: input, shape index: {}]
  %s2 = inlined_call_operand.vmem [shape: f32[32,128], index: 2, kind: input, shape index: {}]
  %s3 = inlined_call_operand.vmem [shape: f32[1,128], index: 3, kind: input, shape index: {}]
  %s4 = inlined_call_operand.vmem [shape: f32[256,64], index: 4, kind: input, shape index: {}]
  %s5 = inlined_call_operand.vmem [shape: f32[1,64], index: 5, kind: input, shape index: {}]
  %s6 = inlined_call_operand.vmem [shape: f32[1,64], index: 6, kind: input, shape index: {}]
  %s7 = inlined_call_operand.vmem [shape: f32[1,64], index: 7, kind: input, shape index: {}]
  %s8 = inlined_call_operand.vmem [shape: f32[64,4], index: 8, kind: input, shape index: {}]
  %s9 = inlined_call_operand.vmem [shape: f32[1,4], index: 9, kind: input, shape index: {}]
  %s10 = inlined_call_operand.hbm [shape: f32[2,4], index: 10, kind: output, shape index: {}]
  %s11 = sld [smem:[#allocation0]]
  $region50: #{tpu_custom_call.1} parent=0
    _
  %s13 = ssub.s32 1, %s11
  %s14 = scalar_select 0, %s13, %s11
  $region1: #{tpu_custom_call.1} parent=0
    #allocation2 [shape = 'u8[1024]{0}', space=vmem, size = 0x400, scoped, tag = 'output window, operand 0, single buffered']
    #allocation3 [shape = 's32[1]{0}', space=sflag, size = 0x4, scoped, tag = 'scoped memory for tpu_custom_call.1']
    %15 = vsyncpa [#allocation3], 0
    // Predicated region
    $region2: #{tpu_custom_call.1} parent=1 // pred_check
      _
    $region3: #{tpu_custom_call.1} parent=1 // pred_check_branch
      %17 = sbr.rel (0) target = $region5
    $region4: #{tpu_custom_call.1} parent=1 // pred_region
      _
    $region5: #{tpu_custom_call.1} parent=1 // pred_fallthru
      _
    // Predicated region
    $region6: #{tpu_custom_call.1} parent=1 // pred_check
      _
    $region7: #{tpu_custom_call.1} parent=1 // pred_check_branch
      %19 = sbr.rel (0) target = $region9
    $region8: #{tpu_custom_call.1} parent=1 // pred_region
      _
    $region9: #{tpu_custom_call.1} parent=1 // pred_fallthru
      _
    // Predicated region
    $region10: #{tpu_custom_call.1} parent=1 // pred_check
      _
    $region11: #{tpu_custom_call.1} parent=1 // pred_check_branch
      %21 = sbr.rel (0) target = $region13
    $region12: #{tpu_custom_call.1} parent=1 // pred_region
      _
    $region13: #{tpu_custom_call.1} parent=1 // pred_fallthru
      _
    // Predicated region
    $region14: #{tpu_custom_call.1} parent=1 // pred_check
      _
    $region15: #{tpu_custom_call.1} parent=1 // pred_check_branch
      %23 = sbr.rel (0) target = $region17
    $region16: #{tpu_custom_call.1} parent=1 // pred_region
      _
    $region17: #{tpu_custom_call.1} parent=1 // pred_fallthru
      _
    // Predicated region
    $region18: #{tpu_custom_call.1} parent=1 // pred_check
      _
    $region19: #{tpu_custom_call.1} parent=1 // pred_check_branch
      %25 = sbr.rel (0) target = $region21
    $region20: #{tpu_custom_call.1} parent=1 // pred_region
      _
    $region21: #{tpu_custom_call.1} parent=1 // pred_fallthru
      _
    // Predicated region
    $region22: #{tpu_custom_call.1} parent=1 // pred_check
      _
    $region23: #{tpu_custom_call.1} parent=1 // pred_check_branch
      %27 = sbr.rel (0) target = $region25
    $region24: #{tpu_custom_call.1} parent=1 // pred_region
      _
    $region25: #{tpu_custom_call.1} parent=1 // pred_fallthru
      _
    // Predicated region
    $region26: #{tpu_custom_call.1} parent=1 // pred_check
      _
    $region27: #{tpu_custom_call.1} parent=1 // pred_check_branch
      %29 = sbr.rel (0) target = $region29
    $region28: #{tpu_custom_call.1} parent=1 // pred_region
      _
    $region29: #{tpu_custom_call.1} parent=1 // pred_fallthru
      _
    // Predicated region
    $region30: #{tpu_custom_call.1} parent=1 // pred_check
      _
    $region31: #{tpu_custom_call.1} parent=1 // pred_check_branch
      %31 = sbr.rel (0) target = $region33
    $region32: #{tpu_custom_call.1} parent=1 // pred_region
      _
    $region33: #{tpu_custom_call.1} parent=1 // pred_fallthru
      _
    // Predicated region
    $region34: #{tpu_custom_call.1} parent=1 // pred_check
      _
    $region35: #{tpu_custom_call.1} parent=1 // pred_check_branch
      %33 = sbr.rel (0) target = $region37
    $region36: #{tpu_custom_call.1} parent=1 // pred_region
      _
    $region37: #{tpu_custom_call.1} parent=1 // pred_fallthru
      _
    // Predicated region
    $region38: #{tpu_custom_call.1} parent=1 // pred_check
      _
    $region39: #{tpu_custom_call.1} parent=1 // pred_check_branch
      %35 = sbr.rel (0) target = $region41
    $region40: #{tpu_custom_call.1} parent=1 // pred_region
      _
    $region41: #{tpu_custom_call.1} parent=1 // pred_fallthru
      _
    %v36 = vld [vmem:[%s0] sm:$0xff]
    %v37 = vld [vmem:[%s0 + $0x8] sm:$0xff]
    %v38 = vld [vmem:[%s1] sm:$0xff]
    %v39 = vld [vmem:[%s1 + $0x8] sm:$0xff]
    %v40 = vld [vmem:[%s1 + $0x10] sm:$0xff]
    %v41 = vld [vmem:[%s1 + $0x18] sm:$0xff]
    %v42 = vld [vmem:[%s1 + $0x20] sm:$0xff]
    %v43 = vld [vmem:[%s1 + $0x28] sm:$0xff]
    %v44 = vld [vmem:[%s1 + $0x30] sm:$0xff]
    %v45 = vld [vmem:[%s1 + $0x38] sm:$0xff]
    %v46 = vld [vmem:[%s1 + $0x40] sm:$0xf]
    %v47 = vld [vmem:[%s3] sm:$0x1]
    %v49 = vlaneseq
    %v50 = vshrl.u32 %v49, 7
    %v51 = vsub.s32 0, %v50
    %v52 = vrot.slane %v47, %v51
    %vm54 = vcmask 556032
    %v56 = vsel %vm54, %v36, 0
    %v59 = vsel %vm54, %v37, 0
    %vm61 = vcmask 1043456
    %v63 = vsel %vm61, %v46, 0
    %65 = vmatprep.subr.mxu0 0.0
    %66 = vmatpush1.msra.mxu0 %v38
    %67 = vmatprep.subr.mxu0 0.0
    %68 = vmatpush1.msra.mxu0 %v39
    %69 = vmatprep.subr.mxu0 0.0
    %70 = vmatpush1.msra.mxu0 %v40
    %71 = vmatprep.subr.mxu0 0.0
    %72 = vmatpush1.msra.mxu0 %v41
    %73 = vmatprep.subr.mxu0 0.0
    %74 = vmatpush1.msra.mxu0 %v42
    %75 = vmatprep.subr.mxu0 0.0
    %76 = vmatpush1.msra.mxu0 %v43
    %77 = vmatprep.subr.mxu0 0.0
    %78 = vmatpush1.msra.mxu0 %v44
    %79 = vmatprep.subr.mxu0 0.0
    %80 = vmatpush1.msra.mxu0 %v45
    %81 = vmatprep.subr.mxu0 0.0
    %82 = vmatpush1.msra.mxu0 %v63
    %83 = vmatprep.subr.mxu0 0.0
    %84 = vmatpush1.msra.mxu0 0.0
    %85 = vmatprep.subr.mxu0 0.0
    %86 = vmatpush1.msra.mxu0 0.0
    %87 = vmatprep.subr.mxu0 0.0
    %88 = vmatpush1.msra.mxu0 0.0
    %89 = vmatprep.subr.mxu0 0.0
    %90 = vmatpush1.msra.mxu0 0.0
    %91 = vmatprep.subr.mxu0 0.0
    %92 = vmatpush1.msra.mxu0 0.0
    %93 = vmatprep.subr.mxu0 0.0
    %94 = vmatpush1.msra.mxu0 0.0
    %95 = vmatprep.subr.mxu0 0.0
    %96 = vmatpush1.msra.mxu0 0.0
    %97 = vmatprep.subr.mxu0 0.0
    %98 = vmatpush1.msra.mxu0 0.0
    %99 = vmatprep.subr.mxu0 0.0
    %100 = vmatpush1.msra.mxu0 0.0
    %101 = vmatprep.subr.mxu0 0.0
    %102 = vmatpush1.msra.mxu0 0.0
    %103 = vmatprep.subr.mxu0 0.0
    %104 = vmatpush1.msra.mxu0 0.0
    %105 = vmatprep.subr.mxu0 0.0
    %106 = vmatpush1.msra.mxu0 0.0
    %107 = vmatprep.subr.mxu0 0.0
    %108 = vmatpush1.msra.mxu0 0.0
    %109 = vmatprep.subr.mxu0 0.0
    %110 = vmatpush1.msra.mxu0 0.0
    %111 = vmatprep.subr.mxu0 0.0
    %112 = vmatpush1.msra.mxu0 0.0
    %113 = vmatprep.subr.mxu0 0.0
    %114 = vmatpush1.msra.mxu0 0.0
    %115 = vmatprep.subr.mxu0 0.0
    %116 = vmatpush1.msra.mxu0 0.0
    %117 = vmatprep.subr.mxu0 0.0
    %118 = vmatpush1.msra.mxu0 0.0
    %119 = vmatprep.subr.mxu0 0.0
    %120 = vmatpush1.msra.mxu0 0.0
    %121 = vmatprep.subr.mxu0 0.0
    %122 = vmatpush1.msra.mxu0 0.0
    %123 = vmatprep.subr.mxu0 0.0
    %124 = vmatpush1.msra.mxu0 0.0
    %125 = vmatprep.subr.mxu0 0.0
    %126 = vmatpush1.msra.mxu0 0.0
    %127 = vmatprep.subr.mxu0 0.0
    %128 = vmatpush1.msra.mxu0 0.0
    %129 = vmatprep.mubr.f32.mxu0 0.0
    %130 = vmatmul.mubr.f32.gmra.mrb[0].mxu0 %v56
    %v131 = vpop.f32.mrb[0].mxu0
    %v132 = vadd.f32 %v52, %v131
    %v133 = vpop.f32.mrb[0].mxu0
    %134 = vmatprep.mubr.f32.mxu0 0.0
    %135 = vmatmul.mubr.f32.gmra.mrb[0].mxu0 %v59
    %v136 = vpop.f32.mrb[0].mxu0
    %v137 = vadd.f32 %v52, %v136
    %v138 = vpop.f32.mrb[0].mxu0
    %139 = vdwg.mxu0
    %v140 = vld [vmem:[%s2] sm:$0xff]
    %v141 = vld [vmem:[%s2 + $0x8] sm:$0xff]
    %v142 = vld [vmem:[%s2 + $0x10] sm:$0xff]
    %v143 = vld [vmem:[%s2 + $0x18] sm:$0xff]
    %v144 = vlaneseq
    %v145 = vand.u32 %v144, 127
    %vm146 = vcmp.ge.s32.totalorder %v145, 64
    %vm147 = vcmp.lt.s32.totalorder %v145, 96
    %vm148 = vmand %vm146, %vm147
    %vm149 = vcmask 261120
    %v151 = vsel %vm149, 0.0, 0
    %153 = vmatprep.subr.mxu0 0.0
    %154 = vmatpush1.msra.mxu0 %v140
    %155 = vmatprep.subr.mxu0 0.0
    %156 = vmatpush1.msra.mxu0 %v141
    %157 = vmatprep.subr.mxu0 0.0
    %158 = vmatpush1.msra.mxu0 %v142
    %159 = vmatprep.subr.mxu0 0.0
    %160 = vmatpush1.msra.mxu0 %v143
    %161 = vmatprep.subr.mxu0 0.0
    %162 = vmatpush1.msra.mxu0 0.0
    %163 = vmatprep.subr.mxu0 0.0
    %164 = vmatpush1.msra.mxu0 0.0
    %165 = vmatprep.subr.mxu0 0.0
    %166 = vmatpush1.msra.mxu0 0.0
    %167 = vmatprep.subr.mxu0 0.0
    %168 = vmatpush1.msra.mxu0 0.0
    %169 = vmatprep.subr.mxu0 0.0
    %170 = vmatpush1.msra.mxu0 0.0
    %171 = vmatprep.subr.mxu0 0.0
    %172 = vmatpush1.msra.mxu0 0.0
    %173 = vmatprep.subr.mxu0 0.0
    %174 = vmatpush1.msra.mxu0 0.0
    %175 = vmatprep.subr.mxu0 0.0
    %176 = vmatpush1.msra.mxu0 0.0
    %177 = vmatprep.subr.mxu0 0.0
    %178 = vmatpush1.msra.mxu0 0.0
    %179 = vmatprep.subr.mxu0 0.0
    %180 = vmatpush1.msra.mxu0 0.0
    %181 = vmatprep.subr.mxu0 0.0
    %182 = vmatpush1.msra.mxu0 0.0
    %183 = vmatprep.subr.mxu0 0.0
    %184 = vmatpush1.msra.mxu0 0.0
    %185 = vmatprep.subr.mxu0 0.0
    %186 = vmatpush1.msra.mxu0 0.0
    %187 = vmatprep.subr.mxu0 0.0
    %188 = vmatpush1.msra.mxu0 0.0
    %189 = vmatprep.subr.mxu0 0.0
    %190 = vmatpush1.msra.mxu0 0.0
    %191 = vmatprep.subr.mxu0 0.0
    %192 = vmatpush1.msra.mxu0 0.0
    %193 = vmatprep.subr.mxu0 0.0
    %194 = vmatpush1.msra.mxu0 0.0
    %195 = vmatprep.subr.mxu0 0.0
    %196 = vmatpush1.msra.mxu0 0.0
    %197 = vmatprep.subr.mxu0 0.0
    %198 = vmatpush1.msra.mxu0 0.0
    %199 = vmatprep.subr.mxu0 0.0
    %200 = vmatpush1.msra.mxu0 0.0
    %201 = vmatprep.subr.mxu0 0.0
    %202 = vmatpush1.msra.mxu0 0.0
    %203 = vmatprep.subr.mxu0 0.0
    %204 = vmatpush1.msra.mxu0 0.0
    %205 = vmatprep.subr.mxu0 0.0
    %206 = vmatpush1.msra.mxu0 0.0
    %207 = vmatprep.subr.mxu0 0.0
    %208 = vmatpush1.msra.mxu0 0.0
    %209 = vmatprep.subr.mxu0 0.0
    %210 = vmatpush1.msra.mxu0 0.0
    %211 = vmatprep.subr.mxu0 0.0
    %212 = vmatpush1.msra.mxu0 0.0
    %213 = vmatprep.subr.mxu0 0.0
    %214 = vmatpush1.msra.mxu0 0.0
    %215 = vmatprep.subr.mxu0 0.0
    %216 = vmatpush1.msra.mxu0 0.0
    %217 = vmatprep.mubr.f32.mxu0 0.0
    %218 = vmatmul.mubr.f32.gmra.mrb[0].mxu0 %v151
    %v219 = vpop.f32.mrb[0].mxu0
    %v220 = vadd.f32 0.0, %v219
    %v221 = vpop.f32.mrb[0].mxu0
    %222 = vdwg.mxu0
    %v224 = vrot.slane %v220, 1
    %v227 = vadd.f32 %v132, %v220
    %v228 = vadd.f32 %v137, %v224
    %v229 = vtanh.pop %v227
    %v230 = vtanh.pop %v228
    %v231 = vxor.u32 %v227, 2147483648
    %v232 = vxor.u32 %v228, 2147483648
    %v233 = vmul.f32 %v231, 1.442695
    %v234 = vpow.pop %v233
    %v235 = vmul.f32 %v232, 1.442695
    %v236 = vpow.pop %v235
    %v237 = vadd.f32 %v234, 1.0
    %v238 = vadd.f32 %v236, 1.0
    %v239 = vrcp.pop %v237
    %v240 = vmul.f32 1.0, %v239
    %v241 = vrcp.pop %v238
    %v242 = vmul.f32 1.0, %v241
    %v245 = vrot.slane %v230, 7
    %vm246 = vcmask 1041409
    %v247 = vsel %vm246, %v245, %v229
    %v251 = vrot.slane %v242, 7
    %v252 = vsel %vm246, %v251, %v240
    %v254 = vsel %vm148, %v247, %v252
    %v255 = vmul.f32 %v254, 0.0
    %257 = vrot.lane.b32.xlu0 %v254, 64
    %v258 = vpop.permute.xlu0 %257
    %v260 = vmul.f32 %v254, %v258
    %262 = vrot.lane.b32.xlu0 %v260, 32
    %v263 = vpop.permute.xlu0 %262
    %v265 = vadd.f32 %v255, %v263
    %v266 = vtanh.pop %v265
    %268 = vrot.lane.b32.xlu0 %v266, 64
    %v269 = vpop.permute.xlu0 %268
    %v271 = vmul.f32 %v254, %v269
    %v272 = vld [vmem:[%s4] sm:$0xff]
    %v273 = vld [vmem:[%s4 + $0x8] sm:$0xff]
    %v274 = vld [vmem:[%s4 + $0x10] sm:$0xff]
    %v275 = vld [vmem:[%s4 + $0x18] sm:$0xff]
    %277 = vrot.lane.b32.xlu0 %v271, 32
    %v278 = vpop.permute.xlu0 %277
    %v279 = vsel %vm149, %v278, 0
    %281 = vmatprep.subr.mxu0 0.0
    %282 = vmatpush1.msra.mxu0 %v140
    %283 = vmatprep.subr.mxu0 0.0
    %284 = vmatpush1.msra.mxu0 %v141
    %285 = vmatprep.subr.mxu0 0.0
    %286 = vmatpush1.msra.mxu0 %v142
    %287 = vmatprep.subr.mxu0 0.0
    %288 = vmatpush1.msra.mxu0 %v143
    %289 = vmatprep.subr.mxu0 0.0
    %290 = vmatpush1.msra.mxu0 0.0
    %291 = vmatprep.subr.mxu0 0.0
    %292 = vmatpush1.msra.mxu0 0.0
    %293 = vmatprep.subr.mxu0 0.0
    %294 = vmatpush1.msra.mxu0 0.0
    %295 = vmatprep.subr.mxu0 0.0
    %296 = vmatpush1.msra.mxu0 0.0
    %297 = vmatprep.subr.mxu0 0.0
    %298 = vmatpush1.msra.mxu0 0.0
    %299 = vmatprep.subr.mxu0 0.0
    %300 = vmatpush1.msra.mxu0 0.0
    %301 = vmatprep.subr.mxu0 0.0
    %302 = vmatpush1.msra.mxu0 0.0
    %303 = vmatprep.subr.mxu0 0.0
    %304 = vmatpush1.msra.mxu0 0.0
    %305 = vmatprep.subr.mxu0 0.0
    %306 = vmatpush1.msra.mxu0 0.0
    %307 = vmatprep.subr.mxu0 0.0
    %308 = vmatpush1.msra.mxu0 0.0
    %309 = vmatprep.subr.mxu0 0.0
    %310 = vmatpush1.msra.mxu0 0.0
    %311 = vmatprep.subr.mxu0 0.0
    %312 = vmatpush1.msra.mxu0 0.0
    %313 = vmatprep.subr.mxu0 0.0
    %314 = vmatpush1.msra.mxu0 0.0
    %315 = vmatprep.subr.mxu0 0.0
    %316 = vmatpush1.msra.mxu0 0.0
    %317 = vmatprep.subr.mxu0 0.0
    %318 = vmatpush1.msra.mxu0 0.0
    %319 = vmatprep.subr.mxu0 0.0
    %320 = vmatpush1.msra.mxu0 0.0
    %321 = vmatprep.subr.mxu0 0.0
    %322 = vmatpush1.msra.mxu0 0.0
    %323 = vmatprep.subr.mxu0 0.0
    %324 = vmatpush1.msra.mxu0 0.0
    %325 = vmatprep.subr.mxu0 0.0
    %326 = vmatpush1.msra.mxu0 0.0
    %327 = vmatprep.subr.mxu0 0.0
    %328 = vmatpush1.msra.mxu0 0.0
    %329 = vmatprep.subr.mxu0 0.0
    %330 = vmatpush1.msra.mxu0 0.0
    %331 = vmatprep.subr.mxu0 0.0
    %332 = vmatpush1.msra.mxu0 0.0
    %333 = vmatprep.subr.mxu0 0.0
    %334 = vmatpush1.msra.mxu0 0.0
    %335 = vmatprep.subr.mxu0 0.0
    %336 = vmatpush1.msra.mxu0 0.0
    %337 = vmatprep.subr.mxu0 0.0
    %338 = vmatpush1.msra.mxu0 0.0
    %339 = vmatprep.subr.mxu0 0.0
    %340 = vmatpush1.msra.mxu0 0.0
    %341 = vmatprep.subr.mxu0 0.0
    %342 = vmatpush1.msra.mxu0 0.0
    %343 = vmatprep.subr.mxu0 0.0
    %344 = vmatpush1.msra.mxu0 0.0
    %345 = vmatprep.mubr.f32.mxu0 0.0
    %346 = vmatmul.mubr.f32.gmra.mrb[0].mxu0 %v279
    %v347 = vpop.f32.mrb[0].mxu0
    %v348 = vadd.f32 0.0, %v347
    %v349 = vpop.f32.mrb[0].mxu0
    %350 = vdwg.mxu0
    %v352 = vrot.slane %v348, 7
    %v355 = vadd.f32 %v132, %v352
    %v356 = vadd.f32 %v137, %v348
    %v357 = vtanh.pop %v355
    %v358 = vtanh.pop %v356
    %v359 = vxor.u32 %v355, 2147483648
    %v360 = vxor.u32 %v356, 2147483648
    %v361 = vmul.f32 %v359, 1.442695
    %v362 = vpow.pop %v361
    %v363 = vmul.f32 %v360, 1.442695
    %v364 = vpow.pop %v363
    %v365 = vadd.f32 %v362, 1.0
    %v366 = vadd.f32 %v364, 1.0
    %v367 = vrcp.pop %v365
    %v368 = vmul.f32 1.0, %v367
    %v369 = vrcp.pop %v366
    %v370 = vmul.f32 1.0, %v369
    %v373 = vrot.slane %v357, 1
    %v374 = vsel %vm246, %v358, %v373
    %v378 = vrot.slane %v368, 1
    %v379 = vsel %vm246, %v370, %v378
    %v381 = vsel %vm148, %v374, %v379
    %v382 = vmul.f32 %v381, %v265
    %384 = vrot.lane.b32.xlu0 %v381, 64
    %v385 = vpop.permute.xlu0 %384
    %v387 = vmul.f32 %v381, %v385
    %389 = vrot.lane.b32.xlu0 %v387, 32
    %v390 = vpop.permute.xlu0 %389
    %v392 = vadd.f32 %v382, %v390
    %v393 = vtanh.pop %v392
    %395 = vrot.lane.b32.xlu0 %v393, 64
    %v396 = vpop.permute.xlu0 %395
    %v398 = vmul.f32 %v381, %v396
    %v399 = vld [vmem:[%s4 + $0x20] sm:$0xff]
    %v400 = vld [vmem:[%s4 + $0x28] sm:$0xff]
    %v401 = vld [vmem:[%s4 + $0x30] sm:$0xff]
    %v402 = vld [vmem:[%s4 + $0x38] sm:$0xff]
    %404 = vrot.lane.b32.xlu0 %v398, 32
    %v405 = vpop.permute.xlu0 %404
    %v406 = vsel %vm149, %v405, 0
    %408 = vmatprep.subr.mxu0 0.0
    %409 = vmatpush1.msra.mxu0 %v399
    %410 = vmatprep.subr.mxu0 0.0
    %411 = vmatpush1.msra.mxu0 %v400
    %412 = vmatprep.subr.mxu0 0.0
    %413 = vmatpush1.msra.mxu0 %v401
    %414 = vmatprep.subr.mxu0 0.0
    %415 = vmatpush1.msra.mxu0 %v402
    %416 = vmatprep.subr.mxu0 0.0
    %417 = vmatpush1.msra.mxu0 0.0
    %418 = vmatprep.subr.mxu0 0.0
    %419 = vmatpush1.msra.mxu0 0.0
    %420 = vmatprep.subr.mxu0 0.0
    %421 = vmatpush1.msra.mxu0 0.0
    %422 = vmatprep.subr.mxu0 0.0
    %423 = vmatpush1.msra.mxu0 0.0
    %424 = vmatprep.subr.mxu0 0.0
    %425 = vmatpush1.msra.mxu0 0.0
    %426 = vmatprep.subr.mxu0 0.0
    %427 = vmatpush1.msra.mxu0 0.0
    %428 = vmatprep.subr.mxu0 0.0
    %429 = vmatpush1.msra.mxu0 0.0
    %430 = vmatprep.subr.mxu0 0.0
    %431 = vmatpush1.msra.mxu0 0.0
    %432 = vmatprep.subr.mxu0 0.0
    %433 = vmatpush1.msra.mxu0 0.0
    %434 = vmatprep.subr.mxu0 0.0
    %435 = vmatpush1.msra.mxu0 0.0
    %436 = vmatprep.subr.mxu0 0.0
    %437 = vmatpush1.msra.mxu0 0.0
    %438 = vmatprep.subr.mxu0 0.0
    %439 = vmatpush1.msra.mxu0 0.0
    %440 = vmatprep.subr.mxu0 0.0
    %441 = vmatpush1.msra.mxu0 0.0
    %442 = vmatprep.subr.mxu0 0.0
    %443 = vmatpush1.msra.mxu0 0.0
    %444 = vmatprep.subr.mxu0 0.0
    %445 = vmatpush1.msra.mxu0 0.0
    %446 = vmatprep.subr.mxu0 0.0
    %447 = vmatpush1.msra.mxu0 0.0
    %448 = vmatprep.subr.mxu0 0.0
    %449 = vmatpush1.msra.mxu0 0.0
    %450 = vmatprep.subr.mxu0 0.0
    %451 = vmatpush1.msra.mxu0 0.0
    %452 = vmatprep.subr.mxu0 0.0
    %453 = vmatpush1.msra.mxu0 0.0
    %454 = vmatprep.subr.mxu0 0.0
    %455 = vmatpush1.msra.mxu0 0.0
    %456 = vmatprep.subr.mxu0 0.0
    %457 = vmatpush1.msra.mxu0 0.0
    %458 = vmatprep.subr.mxu0 0.0
    %459 = vmatpush1.msra.mxu0 0.0
    %460 = vmatprep.subr.mxu0 0.0
    %461 = vmatpush1.msra.mxu0 0.0
    %462 = vmatprep.subr.mxu0 0.0
    %463 = vmatpush1.msra.mxu0 0.0
    %464 = vmatprep.subr.mxu0 0.0
    %465 = vmatpush1.msra.mxu0 0.0
    %466 = vmatprep.subr.mxu0 0.0
    %467 = vmatpush1.msra.mxu0 0.0
    %468 = vmatprep.subr.mxu0 0.0
    %469 = vmatpush1.msra.mxu0 0.0
    %470 = vmatprep.subr.mxu0 0.0
    %471 = vmatpush1.msra.mxu0 0.0
    %472 = vmatprep.mubr.f32.mxu0 0.0
    %473 = vmatmul.mubr.f32.gmra.mrb[0].mxu0 %v406
    %v474 = vpop.f32.mrb[0].mxu0
    %v475 = vadd.f32 0.0, %v474
    %v476 = vpop.f32.mrb[0].mxu0
    %477 = vdwg.mxu0
    %478 = vmatprep.subr.mxu0 0.0
    %479 = vmatpush1.msra.mxu0 %v272
    %480 = vmatprep.subr.mxu0 0.0
    %481 = vmatpush1.msra.mxu0 %v273
    %482 = vmatprep.subr.mxu0 0.0
    %483 = vmatpush1.msra.mxu0 %v274
    %484 = vmatprep.subr.mxu0 0.0
    %485 = vmatpush1.msra.mxu0 %v275
    %486 = vmatprep.subr.mxu0 0.0
    %487 = vmatpush1.msra.mxu0 0.0
    %488 = vmatprep.subr.mxu0 0.0
    %489 = vmatpush1.msra.mxu0 0.0
    %490 = vmatprep.subr.mxu0 0.0
    %491 = vmatpush1.msra.mxu0 0.0
    %492 = vmatprep.subr.mxu0 0.0
    %493 = vmatpush1.msra.mxu0 0.0
    %494 = vmatprep.subr.mxu0 0.0
    %495 = vmatpush1.msra.mxu0 0.0
    %496 = vmatprep.subr.mxu0 0.0
    %497 = vmatpush1.msra.mxu0 0.0
    %498 = vmatprep.subr.mxu0 0.0
    %499 = vmatpush1.msra.mxu0 0.0
    %500 = vmatprep.subr.mxu0 0.0
    %501 = vmatpush1.msra.mxu0 0.0
    %502 = vmatprep.subr.mxu0 0.0
    %503 = vmatpush1.msra.mxu0 0.0
    %504 = vmatprep.subr.mxu0 0.0
    %505 = vmatpush1.msra.mxu0 0.0
    %506 = vmatprep.subr.mxu0 0.0
    %507 = vmatpush1.msra.mxu0 0.0
    %508 = vmatprep.subr.mxu0 0.0
    %509 = vmatpush1.msra.mxu0 0.0
    %510 = vmatprep.subr.mxu0 0.0
    %511 = vmatpush1.msra.mxu0 0.0
    %512 = vmatprep.subr.mxu0 0.0
    %513 = vmatpush1.msra.mxu0 0.0
    %514 = vmatprep.subr.mxu0 0.0
    %515 = vmatpush1.msra.mxu0 0.0
    %516 = vmatprep.subr.mxu0 0.0
    %517 = vmatpush1.msra.mxu0 0.0
    %518 = vmatprep.subr.mxu0 0.0
    %519 = vmatpush1.msra.mxu0 0.0
    %520 = vmatprep.subr.mxu0 0.0
    %521 = vmatpush1.msra.mxu0 0.0
    %522 = vmatprep.subr.mxu0 0.0
    %523 = vmatpush1.msra.mxu0 0.0
    %524 = vmatprep.subr.mxu0 0.0
    %525 = vmatpush1.msra.mxu0 0.0
    %526 = vmatprep.subr.mxu0 0.0
    %527 = vmatpush1.msra.mxu0 0.0
    %528 = vmatprep.subr.mxu0 0.0
    %529 = vmatpush1.msra.mxu0 0.0
    %530 = vmatprep.subr.mxu0 0.0
    %531 = vmatpush1.msra.mxu0 0.0
    %532 = vmatprep.subr.mxu0 0.0
    %533 = vmatpush1.msra.mxu0 0.0
    %534 = vmatprep.subr.mxu0 0.0
    %535 = vmatpush1.msra.mxu0 0.0
    %536 = vmatprep.subr.mxu0 0.0
    %537 = vmatpush1.msra.mxu0 0.0
    %538 = vmatprep.subr.mxu0 0.0
    %539 = vmatpush1.msra.mxu0 0.0
    %540 = vmatprep.subr.mxu0 0.0
    %541 = vmatpush1.msra.mxu0 0.0
    %542 = vmatprep.mubr.f32.mxu0 0.0
    %543 = vmatmul.mubr.f32.gmra.mrb[0].mxu0 %v279
    %v544 = vpop.f32.mrb[0].mxu0
    %v545 = vadd.f32 %v475, %v544
    %v546 = vpop.f32.mrb[0].mxu0
    %547 = vdwg.mxu0
    %548 = vmatprep.subr.mxu0 0.0
    %549 = vmatpush1.msra.mxu0 %v140
    %550 = vmatprep.subr.mxu0 0.0
    %551 = vmatpush1.msra.mxu0 %v141
    %552 = vmatprep.subr.mxu0 0.0
    %553 = vmatpush1.msra.mxu0 %v142
    %554 = vmatprep.subr.mxu0 0.0
    %555 = vmatpush1.msra.mxu0 %v143
    %556 = vmatprep.subr.mxu0 0.0
    %557 = vmatpush1.msra.mxu0 0.0
    %558 = vmatprep.subr.mxu0 0.0
    %559 = vmatpush1.msra.mxu0 0.0
    %560 = vmatprep.subr.mxu0 0.0
    %561 = vmatpush1.msra.mxu0 0.0
    %562 = vmatprep.subr.mxu0 0.0
    %563 = vmatpush1.msra.mxu0 0.0
    %564 = vmatprep.subr.mxu0 0.0
    %565 = vmatpush1.msra.mxu0 0.0
    %566 = vmatprep.subr.mxu0 0.0
    %567 = vmatpush1.msra.mxu0 0.0
    %568 = vmatprep.subr.mxu0 0.0
    %569 = vmatpush1.msra.mxu0 0.0
    %570 = vmatprep.subr.mxu0 0.0
    %571 = vmatpush1.msra.mxu0 0.0
    %572 = vmatprep.subr.mxu0 0.0
    %573 = vmatpush1.msra.mxu0 0.0
    %574 = vmatprep.subr.mxu0 0.0
    %575 = vmatpush1.msra.mxu0 0.0
    %576 = vmatprep.subr.mxu0 0.0
    %577 = vmatpush1.msra.mxu0 0.0
    %578 = vmatprep.subr.mxu0 0.0
    %579 = vmatpush1.msra.mxu0 0.0
    %580 = vmatprep.subr.mxu0 0.0
    %581 = vmatpush1.msra.mxu0 0.0
    %582 = vmatprep.subr.mxu0 0.0
    %583 = vmatpush1.msra.mxu0 0.0
    %584 = vmatprep.subr.mxu0 0.0
    %585 = vmatpush1.msra.mxu0 0.0
    %586 = vmatprep.subr.mxu0 0.0
    %587 = vmatpush1.msra.mxu0 0.0
    %588 = vmatprep.subr.mxu0 0.0
    %589 = vmatpush1.msra.mxu0 0.0
    %590 = vmatprep.subr.mxu0 0.0
    %591 = vmatpush1.msra.mxu0 0.0
    %592 = vmatprep.subr.mxu0 0.0
    %593 = vmatpush1.msra.mxu0 0.0
    %594 = vmatprep.subr.mxu0 0.0
    %595 = vmatpush1.msra.mxu0 0.0
    %596 = vmatprep.subr.mxu0 0.0
    %597 = vmatpush1.msra.mxu0 0.0
    %598 = vmatprep.subr.mxu0 0.0
    %599 = vmatpush1.msra.mxu0 0.0
    %600 = vmatprep.subr.mxu0 0.0
    %601 = vmatpush1.msra.mxu0 0.0
    %602 = vmatprep.subr.mxu0 0.0
    %603 = vmatpush1.msra.mxu0 0.0
    %604 = vmatprep.subr.mxu0 0.0
    %605 = vmatpush1.msra.mxu0 0.0
    %606 = vmatprep.subr.mxu0 0.0
    %607 = vmatpush1.msra.mxu0 0.0
    %608 = vmatprep.subr.mxu0 0.0
    %609 = vmatpush1.msra.mxu0 0.0
    %610 = vmatprep.subr.mxu0 0.0
    %611 = vmatpush1.msra.mxu0 0.0
    %612 = vmatprep.mubr.f32.mxu0 0.0
    %613 = vmatmul.mubr.f32.gmra.mrb[0].mxu0 %v406
    %v614 = vpop.f32.mrb[0].mxu0
    %v615 = vadd.f32 0.0, %v614
    %v616 = vpop.f32.mrb[0].mxu0
    %617 = vdwg.mxu0
    %v619 = vrot.slane %v615, 6
    %v620 = vrot.slane %v615, 7
    %v623 = vadd.f32 %v132, %v619
    %v624 = vadd.f32 %v137, %v620
    %v625 = vtanh.pop %v623
    %v626 = vtanh.pop %v624
    %v627 = vxor.u32 %v623, 2147483648
    %v628 = vxor.u32 %v624, 2147483648
    %v629 = vmul.f32 %v627, 1.442695
    %v630 = vpow.pop %v629
    %v631 = vmul.f32 %v628, 1.442695
    %v632 = vpow.pop %v631
    %v633 = vadd.f32 %v630, 1.0
    %v634 = vadd.f32 %v632, 1.0
    %v635 = vrcp.pop %v633
    %v636 = vmul.f32 1.0, %v635
    %v637 = vrcp.pop %v634
    %v638 = vmul.f32 1.0, %v637
    %v641 = vrot.slane %v625, 2
    %v642 = vrot.slane %v626, 1
    %v643 = vsel %vm246, %v642, %v641
    %v647 = vrot.slane %v636, 2
    %v648 = vrot.slane %v638, 1
    %v649 = vsel %vm246, %v648, %v647
    %v651 = vsel %vm148, %v643, %v649
    %v652 = vmul.f32 %v651, %v392
    %654 = vrot.lane.b32.xlu0 %v651, 64
    %v655 = vpop.permute.xlu0 %654
    %v657 = vmul.f32 %v651, %v655
    %659 = vrot.lane.b32.xlu0 %v657, 32
    %v660 = vpop.permute.xlu0 %659
    %v662 = vadd.f32 %v652, %v660
    %v663 = vtanh.pop %v662
    %665 = vrot.lane.b32.xlu0 %v663, 64
    %v666 = vpop.permute.xlu0 %665
    %v668 = vmul.f32 %v651, %v666
    %v669 = vld [vmem:[%s4 + $0x40] sm:$0xff]
    %v670 = vld [vmem:[%s4 + $0x48] sm:$0xff]
    %v671 = vld [vmem:[%s4 + $0x50] sm:$0xff]
    %v672 = vld [vmem:[%s4 + $0x58] sm:$0xff]
    %674 = vrot.lane.b32.xlu0 %v668, 32
    %v675 = vpop.permute.xlu0 %674
    %v676 = vsel %vm149, %v675, 0
    %678 = vmatprep.subr.mxu0 0.0
    %679 = vmatpush1.msra.mxu0 %v669
    %680 = vmatprep.subr.mxu0 0.0
    %681 = vmatpush1.msra.mxu0 %v670
    %682 = vmatprep.subr.mxu0 0.0
    %683 = vmatpush1.msra.mxu0 %v671
    %684 = vmatprep.subr.mxu0 0.0
    %685 = vmatpush1.msra.mxu0 %v672
    %686 = vmatprep.subr.mxu0 0.0
    %687 = vmatpush1.msra.mxu0 0.0
    %688 = vmatprep.subr.mxu0 0.0
    %689 = vmatpush1.msra.mxu0 0.0
    %690 = vmatprep.subr.mxu0 0.0
    %691 = vmatpush1.msra.mxu0 0.0
    %692 = vmatprep.subr.mxu0 0.0
    %693 = vmatpush1.msra.mxu0 0.0
    %694 = vmatprep.subr.mxu0 0.0
    %695 = vmatpush1.msra.mxu0 0.0
    %696 = vmatprep.subr.mxu0 0.0
    %697 = vmatpush1.msra.mxu0 0.0
    %698 = vmatprep.subr.mxu0 0.0
    %699 = vmatpush1.msra.mxu0 0.0
    %700 = vmatprep.subr.mxu0 0.0
    %701 = vmatpush1.msra.mxu0 0.0
    %702 = vmatprep.subr.mxu0 0.0
    %703 = vmatpush1.msra.mxu0 0.0
    %704 = vmatprep.subr.mxu0 0.0
    %705 = vmatpush1.msra.mxu0 0.0
    %706 = vmatprep.subr.mxu0 0.0
    %707 = vmatpush1.msra.mxu0 0.0
    %708 = vmatprep.subr.mxu0 0.0
    %709 = vmatpush1.msra.mxu0 0.0
    %710 = vmatprep.subr.mxu0 0.0
    %711 = vmatpush1.msra.mxu0 0.0
    %712 = vmatprep.subr.mxu0 0.0
    %713 = vmatpush1.msra.mxu0 0.0
    %714 = vmatprep.subr.mxu0 0.0
    %715 = vmatpush1.msra.mxu0 0.0
    %716 = vmatprep.subr.mxu0 0.0
    %717 = vmatpush1.msra.mxu0 0.0
    %718 = vmatprep.subr.mxu0 0.0
    %719 = vmatpush1.msra.mxu0 0.0
    %720 = vmatprep.subr.mxu0 0.0
    %721 = vmatpush1.msra.mxu0 0.0
    %722 = vmatprep.subr.mxu0 0.0
    %723 = vmatpush1.msra.mxu0 0.0
    %724 = vmatprep.subr.mxu0 0.0
    %725 = vmatpush1.msra.mxu0 0.0
    %726 = vmatprep.subr.mxu0 0.0
    %727 = vmatpush1.msra.mxu0 0.0
    %728 = vmatprep.subr.mxu0 0.0
    %729 = vmatpush1.msra.mxu0 0.0
    %730 = vmatprep.subr.mxu0 0.0
    %731 = vmatpush1.msra.mxu0 0.0
    %732 = vmatprep.subr.mxu0 0.0
    %733 = vmatpush1.msra.mxu0 0.0
    %734 = vmatprep.subr.mxu0 0.0
    %735 = vmatpush1.msra.mxu0 0.0
    %736 = vmatprep.subr.mxu0 0.0
    %737 = vmatpush1.msra.mxu0 0.0
    %738 = vmatprep.subr.mxu0 0.0
    %739 = vmatpush1.msra.mxu0 0.0
    %740 = vmatprep.subr.mxu0 0.0
    %741 = vmatpush1.msra.mxu0 0.0
    %742 = vmatprep.mubr.f32.mxu0 0.0
    %743 = vmatmul.mubr.f32.gmra.mrb[0].mxu0 %v676
    %v744 = vpop.f32.mrb[0].mxu0
    %v745 = vadd.f32 0.0, %v744
    %v746 = vpop.f32.mrb[0].mxu0
    %747 = vdwg.mxu0
    %v748 = vadd.f32 %v545, %v745
    %749 = vmatprep.subr.mxu0 0.0
    %750 = vmatpush1.msra.mxu0 %v140
    %751 = vmatprep.subr.mxu0 0.0
    %752 = vmatpush1.msra.mxu0 %v141
    %753 = vmatprep.subr.mxu0 0.0
    %754 = vmatpush1.msra.mxu0 %v142
    %755 = vmatprep.subr.mxu0 0.0
    %756 = vmatpush1.msra.mxu0 %v143
    %757 = vmatprep.subr.mxu0 0.0
    %758 = vmatpush1.msra.mxu0 0.0
    %759 = vmatprep.subr.mxu0 0.0
    %760 = vmatpush1.msra.mxu0 0.0
    %761 = vmatprep.subr.mxu0 0.0
    %762 = vmatpush1.msra.mxu0 0.0
    %763 = vmatprep.subr.mxu0 0.0
    %764 = vmatpush1.msra.mxu0 0.0
    %765 = vmatprep.subr.mxu0 0.0
    %766 = vmatpush1.msra.mxu0 0.0
    %767 = vmatprep.subr.mxu0 0.0
    %768 = vmatpush1.msra.mxu0 0.0
    %769 = vmatprep.subr.mxu0 0.0
    %770 = vmatpush1.msra.mxu0 0.0
    %771 = vmatprep.subr.mxu0 0.0
    %772 = vmatpush1.msra.mxu0 0.0
    %773 = vmatprep.subr.mxu0 0.0
    %774 = vmatpush1.msra.mxu0 0.0
    %775 = vmatprep.subr.mxu0 0.0
    %776 = vmatpush1.msra.mxu0 0.0
    %777 = vmatprep.subr.mxu0 0.0
    %778 = vmatpush1.msra.mxu0 0.0
    %779 = vmatprep.subr.mxu0 0.0
    %780 = vmatpush1.msra.mxu0 0.0
    %781 = vmatprep.subr.mxu0 0.0
    %782 = vmatpush1.msra.mxu0 0.0
    %783 = vmatprep.subr.mxu0 0.0
    %784 = vmatpush1.msra.mxu0 0.0
    %785 = vmatprep.subr.mxu0 0.0
    %786 = vmatpush1.msra.mxu0 0.0
    %787 = vmatprep.subr.mxu0 0.0
    %788 = vmatpush1.msra.mxu0 0.0
    %789 = vmatprep.subr.mxu0 0.0
    %790 = vmatpush1.msra.mxu0 0.0
    %791 = vmatprep.subr.mxu0 0.0
    %792 = vmatpush1.msra.mxu0 0.0
    %793 = vmatprep.subr.mxu0 0.0
    %794 = vmatpush1.msra.mxu0 0.0
    %795 = vmatprep.subr.mxu0 0.0
    %796 = vmatpush1.msra.mxu0 0.0
    %797 = vmatprep.subr.mxu0 0.0
    %798 = vmatpush1.msra.mxu0 0.0
    %799 = vmatprep.subr.mxu0 0.0
    %800 = vmatpush1.msra.mxu0 0.0
    %801 = vmatprep.subr.mxu0 0.0
    %802 = vmatpush1.msra.mxu0 0.0
    %803 = vmatprep.subr.mxu0 0.0
    %804 = vmatpush1.msra.mxu0 0.0
    %805 = vmatprep.subr.mxu0 0.0
    %806 = vmatpush1.msra.mxu0 0.0
    %807 = vmatprep.subr.mxu0 0.0
    %808 = vmatpush1.msra.mxu0 0.0
    %809 = vmatprep.subr.mxu0 0.0
    %810 = vmatpush1.msra.mxu0 0.0
    %811 = vmatprep.subr.mxu0 0.0
    %812 = vmatpush1.msra.mxu0 0.0
    %813 = vmatprep.mubr.f32.mxu0 0.0
    %814 = vmatmul.mubr.f32.gmra.mrb[0].mxu0 %v676
    %v815 = vpop.f32.mrb[0].mxu0
    %v816 = vadd.f32 0.0, %v815
    %v817 = vpop.f32.mrb[0].mxu0
    %818 = vdwg.mxu0
    %v820 = vrot.slane %v816, 5
    %v821 = vrot.slane %v816, 6
    %v824 = vadd.f32 %v132, %v820
    %v825 = vadd.f32 %v137, %v821
    %v826 = vtanh.pop %v824
    %v827 = vtanh.pop %v825
    %v828 = vxor.u32 %v824, 2147483648
    %v829 = vxor.u32 %v825, 2147483648
    %v830 = vmul.f32 %v828, 1.442695
    %v831 = vpow.pop %v830
    %v832 = vmul.f32 %v829, 1.442695
    %v833 = vpow.pop %v832
    %v834 = vadd.f32 %v831, 1.0
    %v835 = vadd.f32 %v833, 1.0
    %v836 = vrcp.pop %v834
    %v837 = vmul.f32 1.0, %v836
    %v838 = vrcp.pop %v835
    %v839 = vmul.f32 1.0, %v838
    %v842 = vrot.slane %v826, 3
    %v843 = vrot.slane %v827, 2
    %v844 = vsel %vm246, %v843, %v842
    %v848 = vrot.slane %v837, 3
    %v849 = vrot.slane %v839, 2
    %v850 = vsel %vm246, %v849, %v848
    %v852 = vsel %vm148, %v844, %v850
    %v853 = vmul.f32 %v852, %v662
    %855 = vrot.lane.b32.xlu0 %v852, 64
    %v856 = vpop.permute.xlu0 %855
    %v858 = vmul.f32 %v852, %v856
    %860 = vrot.lane.b32.xlu0 %v858, 32
    %v861 = vpop.permute.xlu0 %860
    %v863 = vadd.f32 %v853, %v861
    %v864 = vtanh.pop %v863
    %866 = vrot.lane.b32.xlu0 %v864, 64
    %v867 = vpop.permute.xlu0 %866
    %v869 = vmul.f32 %v852, %v867
    %v870 = vld [vmem:[%s4 + $0x60] sm:$0xff]
    %v871 = vld [vmem:[%s4 + $0x68] sm:$0xff]
    %v872 = vld [vmem:[%s4 + $0x70] sm:$0xff]
    %v873 = vld [vmem:[%s4 + $0x78] sm:$0xff]
    %875 = vrot.lane.b32.xlu0 %v869, 32
    %v876 = vpop.permute.xlu0 %875
    %v877 = vsel %vm149, %v876, 0
    %879 = vmatprep.subr.mxu0 0.0
    %880 = vmatpush1.msra.mxu0 %v870
    %881 = vmatprep.subr.mxu0 0.0
    %882 = vmatpush1.msra.mxu0 %v871
    %883 = vmatprep.subr.mxu0 0.0
    %884 = vmatpush1.msra.mxu0 %v872
    %885 = vmatprep.subr.mxu0 0.0
    %886 = vmatpush1.msra.mxu0 %v873
    %887 = vmatprep.subr.mxu0 0.0
    %888 = vmatpush1.msra.mxu0 0.0
    %889 = vmatprep.subr.mxu0 0.0
    %890 = vmatpush1.msra.mxu0 0.0
    %891 = vmatprep.subr.mxu0 0.0
    %892 = vmatpush1.msra.mxu0 0.0
    %893 = vmatprep.subr.mxu0 0.0
    %894 = vmatpush1.msra.mxu0 0.0
    %895 = vmatprep.subr.mxu0 0.0
    %896 = vmatpush1.msra.mxu0 0.0
    %897 = vmatprep.subr.mxu0 0.0
    %898 = vmatpush1.msra.mxu0 0.0
    %899 = vmatprep.subr.mxu0 0.0
    %900 = vmatpush1.msra.mxu0 0.0
    %901 = vmatprep.subr.mxu0 0.0
    %902 = vmatpush1.msra.mxu0 0.0
    %903 = vmatprep.subr.mxu0 0.0
    %904 = vmatpush1.msra.mxu0 0.0
    %905 = vmatprep.subr.mxu0 0.0
    %906 = vmatpush1.msra.mxu0 0.0
    %907 = vmatprep.subr.mxu0 0.0
    %908 = vmatpush1.msra.mxu0 0.0
    %909 = vmatprep.subr.mxu0 0.0
    %910 = vmatpush1.msra.mxu0 0.0
    %911 = vmatprep.subr.mxu0 0.0
    %912 = vmatpush1.msra.mxu0 0.0
    %913 = vmatprep.subr.mxu0 0.0
    %914 = vmatpush1.msra.mxu0 0.0
    %915 = vmatprep.subr.mxu0 0.0
    %916 = vmatpush1.msra.mxu0 0.0
    %917 = vmatprep.subr.mxu0 0.0
    %918 = vmatpush1.msra.mxu0 0.0
    %919 = vmatprep.subr.mxu0 0.0
    %920 = vmatpush1.msra.mxu0 0.0
    %921 = vmatprep.subr.mxu0 0.0
    %922 = vmatpush1.msra.mxu0 0.0
    %923 = vmatprep.subr.mxu0 0.0
    %924 = vmatpush1.msra.mxu0 0.0
    %925 = vmatprep.subr.mxu0 0.0
    %926 = vmatpush1.msra.mxu0 0.0
    %927 = vmatprep.subr.mxu0 0.0
    %928 = vmatpush1.msra.mxu0 0.0
    %929 = vmatprep.subr.mxu0 0.0
    %930 = vmatpush1.msra.mxu0 0.0
    %931 = vmatprep.subr.mxu0 0.0
    %932 = vmatpush1.msra.mxu0 0.0
    %933 = vmatprep.subr.mxu0 0.0
    %934 = vmatpush1.msra.mxu0 0.0
    %935 = vmatprep.subr.mxu0 0.0
    %936 = vmatpush1.msra.mxu0 0.0
    %937 = vmatprep.subr.mxu0 0.0
    %938 = vmatpush1.msra.mxu0 0.0
    %939 = vmatprep.subr.mxu0 0.0
    %940 = vmatpush1.msra.mxu0 0.0
    %941 = vmatprep.subr.mxu0 0.0
    %942 = vmatpush1.msra.mxu0 0.0
    %943 = vmatprep.mubr.f32.mxu0 0.0
    %944 = vmatmul.mubr.f32.gmra.mrb[0].mxu0 %v877
    %v945 = vpop.f32.mrb[0].mxu0
    %v946 = vadd.f32 0.0, %v945
    %v947 = vpop.f32.mrb[0].mxu0
    %948 = vdwg.mxu0
    %v949 = vadd.f32 %v748, %v946
    %950 = vmatprep.subr.mxu0 0.0
    %951 = vmatpush1.msra.mxu0 %v140
    %952 = vmatprep.subr.mxu0 0.0
    %953 = vmatpush1.msra.mxu0 %v141
    %954 = vmatprep.subr.mxu0 0.0
    %955 = vmatpush1.msra.mxu0 %v142
    %956 = vmatprep.subr.mxu0 0.0
    %957 = vmatpush1.msra.mxu0 %v143
    %958 = vmatprep.subr.mxu0 0.0
    %959 = vmatpush1.msra.mxu0 0.0
    %960 = vmatprep.subr.mxu0 0.0
    %961 = vmatpush1.msra.mxu0 0.0
    %962 = vmatprep.subr.mxu0 0.0
    %963 = vmatpush1.msra.mxu0 0.0
    %964 = vmatprep.subr.mxu0 0.0
    %965 = vmatpush1.msra.mxu0 0.0
    %966 = vmatprep.subr.mxu0 0.0
    %967 = vmatpush1.msra.mxu0 0.0
    %968 = vmatprep.subr.mxu0 0.0
    %969 = vmatpush1.msra.mxu0 0.0
    %970 = vmatprep.subr.mxu0 0.0
    %971 = vmatpush1.msra.mxu0 0.0
    %972 = vmatprep.subr.mxu0 0.0
    %973 = vmatpush1.msra.mxu0 0.0
    %974 = vmatprep.subr.mxu0 0.0
    %975 = vmatpush1.msra.mxu0 0.0
    %976 = vmatprep.subr.mxu0 0.0
    %977 = vmatpush1.msra.mxu0 0.0
    %978 = vmatprep.subr.mxu0 0.0
    %979 = vmatpush1.msra.mxu0 0.0
    %980 = vmatprep.subr.mxu0 0.0
    %981 = vmatpush1.msra.mxu0 0.0
    %982 = vmatprep.subr.mxu0 0.0
    %983 = vmatpush1.msra.mxu0 0.0
    %984 = vmatprep.subr.mxu0 0.0
    %985 = vmatpush1.msra.mxu0 0.0
    %986 = vmatprep.subr.mxu0 0.0
    %987 = vmatpush1.msra.mxu0 0.0
    %988 = vmatprep.subr.mxu0 0.0
    %989 = vmatpush1.msra.mxu0 0.0
    %990 = vmatprep.subr.mxu0 0.0
    %991 = vmatpush1.msra.mxu0 0.0
    %992 = vmatprep.subr.mxu0 0.0
    %993 = vmatpush1.msra.mxu0 0.0
    %994 = vmatprep.subr.mxu0 0.0
    %995 = vmatpush1.msra.mxu0 0.0
    %996 = vmatprep.subr.mxu0 0.0
    %997 = vmatpush1.msra.mxu0 0.0
    %998 = vmatprep.subr.mxu0 0.0
    %999 = vmatpush1.msra.mxu0 0.0
    %1000 = vmatprep.subr.mxu0 0.0
    %1001 = vmatpush1.msra.mxu0 0.0
    %1002 = vmatprep.subr.mxu0 0.0
    %1003 = vmatpush1.msra.mxu0 0.0
    %1004 = vmatprep.subr.mxu0 0.0
    %1005 = vmatpush1.msra.mxu0 0.0
    %1006 = vmatprep.subr.mxu0 0.0
    %1007 = vmatpush1.msra.mxu0 0.0
    %1008 = vmatprep.subr.mxu0 0.0
    %1009 = vmatpush1.msra.mxu0 0.0
    %1010 = vmatprep.subr.mxu0 0.0
    %1011 = vmatpush1.msra.mxu0 0.0
    %1012 = vmatprep.subr.mxu0 0.0
    %1013 = vmatpush1.msra.mxu0 0.0
    %1014 = vmatprep.mubr.f32.mxu0 0.0
    %1015 = vmatmul.mubr.f32.gmra.mrb[0].mxu0 %v877
    %v1016 = vpop.f32.mrb[0].mxu0
    %v1017 = vadd.f32 0.0, %v1016
    %v1018 = vpop.f32.mrb[0].mxu0
    %1019 = vdwg.mxu0
    %v1021 = vrot.slane %v1017, 4
    %v1022 = vrot.slane %v1017, 5
    %v1025 = vadd.f32 %v132, %v1021
    %v1026 = vadd.f32 %v137, %v1022
    %v1027 = vtanh.pop %v1025
    %v1028 = vtanh.pop %v1026
    %v1029 = vxor.u32 %v1025, 2147483648
    %v1030 = vxor.u32 %v1026, 2147483648
    %v1031 = vmul.f32 %v1029, 1.442695
    %v1032 = vpow.pop %v1031
    %v1033 = vmul.f32 %v1030, 1.442695
    %v1034 = vpow.pop %v1033
    %v1035 = vadd.f32 %v1032, 1.0
    %v1036 = vadd.f32 %v1034, 1.0
    %v1037 = vrcp.pop %v1035
    %v1038 = vmul.f32 1.0, %v1037
    %v1039 = vrcp.pop %v1036
    %v1040 = vmul.f32 1.0, %v1039
    %v1043 = vrot.slane %v1027, 4
    %v1044 = vrot.slane %v1028, 3
    %v1045 = vsel %vm246, %v1044, %v1043
    %v1049 = vrot.slane %v1038, 4
    %v1050 = vrot.slane %v1040, 3
    %v1051 = vsel %vm246, %v1050, %v1049
    %v1053 = vsel %vm148, %v1045, %v1051
    %v1054 = vmul.f32 %v1053, %v863
    %1056 = vrot.lane.b32.xlu0 %v1053, 64
    %v1057 = vpop.permute.xlu0 %1056
    %v1059 = vmul.f32 %v1053, %v1057
    %1061 = vrot.lane.b32.xlu0 %v1059, 32
    %v1062 = vpop.permute.xlu0 %1061
    %v1064 = vadd.f32 %v1054, %v1062
    %v1065 = vtanh.pop %v1064
    %1067 = vrot.lane.b32.xlu0 %v1065, 64
    %v1068 = vpop.permute.xlu0 %1067
    %v1070 = vmul.f32 %v1053, %v1068
    %v1071 = vld [vmem:[%s4 + $0x80] sm:$0xff]
    %v1072 = vld [vmem:[%s4 + $0x88] sm:$0xff]
    %v1073 = vld [vmem:[%s4 + $0x90] sm:$0xff]
    %v1074 = vld [vmem:[%s4 + $0x98] sm:$0xff]
    %1076 = vrot.lane.b32.xlu0 %v1070, 32
    %v1077 = vpop.permute.xlu0 %1076
    %v1078 = vsel %vm149, %v1077, 0
    %1080 = vmatprep.subr.mxu0 0.0
    %1081 = vmatpush1.msra.mxu0 %v1071
    %1082 = vmatprep.subr.mxu0 0.0
    %1083 = vmatpush1.msra.mxu0 %v1072
    %1084 = vmatprep.subr.mxu0 0.0
    %1085 = vmatpush1.msra.mxu0 %v1073
    %1086 = vmatprep.subr.mxu0 0.0
    %1087 = vmatpush1.msra.mxu0 %v1074
    %1088 = vmatprep.subr.mxu0 0.0
    %1089 = vmatpush1.msra.mxu0 0.0
    %1090 = vmatprep.subr.mxu0 0.0
    %1091 = vmatpush1.msra.mxu0 0.0
    %1092 = vmatprep.subr.mxu0 0.0
    %1093 = vmatpush1.msra.mxu0 0.0
    %1094 = vmatprep.subr.mxu0 0.0
    %1095 = vmatpush1.msra.mxu0 0.0
    %1096 = vmatprep.subr.mxu0 0.0
    %1097 = vmatpush1.msra.mxu0 0.0
    %1098 = vmatprep.subr.mxu0 0.0
    %1099 = vmatpush1.msra.mxu0 0.0
    %1100 = vmatprep.subr.mxu0 0.0
    %1101 = vmatpush1.msra.mxu0 0.0
    %1102 = vmatprep.subr.mxu0 0.0
    %1103 = vmatpush1.msra.mxu0 0.0
    %1104 = vmatprep.subr.mxu0 0.0
    %1105 = vmatpush1.msra.mxu0 0.0
    %1106 = vmatprep.subr.mxu0 0.0
    %1107 = vmatpush1.msra.mxu0 0.0
    %1108 = vmatprep.subr.mxu0 0.0
    %1109 = vmatpush1.msra.mxu0 0.0
    %1110 = vmatprep.subr.mxu0 0.0
    %1111 = vmatpush1.msra.mxu0 0.0
    %1112 = vmatprep.subr.mxu0 0.0
    %1113 = vmatpush1.msra.mxu0 0.0
    %1114 = vmatprep.subr.mxu0 0.0
    %1115 = vmatpush1.msra.mxu0 0.0
    %1116 = vmatprep.subr.mxu0 0.0
    %1117 = vmatpush1.msra.mxu0 0.0
    %1118 = vmatprep.subr.mxu0 0.0
    %1119 = vmatpush1.msra.mxu0 0.0
    %1120 = vmatprep.subr.mxu0 0.0
    %1121 = vmatpush1.msra.mxu0 0.0
    %1122 = vmatprep.subr.mxu0 0.0
    %1123 = vmatpush1.msra.mxu0 0.0
    %1124 = vmatprep.subr.mxu0 0.0
    %1125 = vmatpush1.msra.mxu0 0.0
    %1126 = vmatprep.subr.mxu0 0.0
    %1127 = vmatpush1.msra.mxu0 0.0
    %1128 = vmatprep.subr.mxu0 0.0
    %1129 = vmatpush1.msra.mxu0 0.0
    %1130 = vmatprep.subr.mxu0 0.0
    %1131 = vmatpush1.msra.mxu0 0.0
    %1132 = vmatprep.subr.mxu0 0.0
    %1133 = vmatpush1.msra.mxu0 0.0
    %1134 = vmatprep.subr.mxu0 0.0
    %1135 = vmatpush1.msra.mxu0 0.0
    %1136 = vmatprep.subr.mxu0 0.0
    %1137 = vmatpush1.msra.mxu0 0.0
    %1138 = vmatprep.subr.mxu0 0.0
    %1139 = vmatpush1.msra.mxu0 0.0
    %1140 = vmatprep.subr.mxu0 0.0
    %1141 = vmatpush1.msra.mxu0 0.0
    %1142 = vmatprep.subr.mxu0 0.0
    %1143 = vmatpush1.msra.mxu0 0.0
    %1144 = vmatprep.mubr.f32.mxu0 0.0
    %1145 = vmatmul.mubr.f32.gmra.mrb[0].mxu0 %v1078
    %v1146 = vpop.f32.mrb[0].mxu0
    %v1147 = vadd.f32 0.0, %v1146
    %v1148 = vpop.f32.mrb[0].mxu0
    %1149 = vdwg.mxu0
    %v1150 = vadd.f32 %v949, %v1147
    %1151 = vmatprep.subr.mxu0 0.0
    %1152 = vmatpush1.msra.mxu0 %v140
    %1153 = vmatprep.subr.mxu0 0.0
    %1154 = vmatpush1.msra.mxu0 %v141
    %1155 = vmatprep.subr.mxu0 0.0
    %1156 = vmatpush1.msra.mxu0 %v142
    %1157 = vmatprep.subr.mxu0 0.0
    %1158 = vmatpush1.msra.mxu0 %v143
    %1159 = vmatprep.subr.mxu0 0.0
    %1160 = vmatpush1.msra.mxu0 0.0
    %1161 = vmatprep.subr.mxu0 0.0
    %1162 = vmatpush1.msra.mxu0 0.0
    %1163 = vmatprep.subr.mxu0 0.0
    %1164 = vmatpush1.msra.mxu0 0.0
    %1165 = vmatprep.subr.mxu0 0.0
    %1166 = vmatpush1.msra.mxu0 0.0
    %1167 = vmatprep.subr.mxu0 0.0
    %1168 = vmatpush1.msra.mxu0 0.0
    %1169 = vmatprep.subr.mxu0 0.0
    %1170 = vmatpush1.msra.mxu0 0.0
    %1171 = vmatprep.subr.mxu0 0.0
    %1172 = vmatpush1.msra.mxu0 0.0
    %1173 = vmatprep.subr.mxu0 0.0
    %1174 = vmatpush1.msra.mxu0 0.0
    %1175 = vmatprep.subr.mxu0 0.0
    %1176 = vmatpush1.msra.mxu0 0.0
    %1177 = vmatprep.subr.mxu0 0.0
    %1178 = vmatpush1.msra.mxu0 0.0
    %1179 = vmatprep.subr.mxu0 0.0
    %1180 = vmatpush1.msra.mxu0 0.0
    %1181 = vmatprep.subr.mxu0 0.0
    %1182 = vmatpush1.msra.mxu0 0.0
    %1183 = vmatprep.subr.mxu0 0.0
    %1184 = vmatpush1.msra.mxu0 0.0
    %1185 = vmatprep.subr.mxu0 0.0
    %1186 = vmatpush1.msra.mxu0 0.0
    %1187 = vmatprep.subr.mxu0 0.0
    %1188 = vmatpush1.msra.mxu0 0.0
    %1189 = vmatprep.subr.mxu0 0.0
    %1190 = vmatpush1.msra.mxu0 0.0
    %1191 = vmatprep.subr.mxu0 0.0
    %1192 = vmatpush1.msra.mxu0 0.0
    %1193 = vmatprep.subr.mxu0 0.0
    %1194 = vmatpush1.msra.mxu0 0.0
    %1195 = vmatprep.subr.mxu0 0.0
    %1196 = vmatpush1.msra.mxu0 0.0
    %1197 = vmatprep.subr.mxu0 0.0
    %1198 = vmatpush1.msra.mxu0 0.0
    %1199 = vmatprep.subr.mxu0 0.0
    %1200 = vmatpush1.msra.mxu0 0.0
    %1201 = vmatprep.subr.mxu0 0.0
    %1202 = vmatpush1.msra.mxu0 0.0
    %1203 = vmatprep.subr.mxu0 0.0
    %1204 = vmatpush1.msra.mxu0 0.0
    %1205 = vmatprep.subr.mxu0 0.0
    %1206 = vmatpush1.msra.mxu0 0.0
    %1207 = vmatprep.subr.mxu0 0.0
    %1208 = vmatpush1.msra.mxu0 0.0
    %1209 = vmatprep.subr.mxu0 0.0
    %1210 = vmatpush1.msra.mxu0 0.0
    %1211 = vmatprep.subr.mxu0 0.0
    %1212 = vmatpush1.msra.mxu0 0.0
    %1213 = vmatprep.subr.mxu0 0.0
    %1214 = vmatpush1.msra.mxu0 0.0
    %1215 = vmatprep.mubr.f32.mxu0 0.0
    %1216 = vmatmul.mubr.f32.gmra.mrb[0].mxu0 %v1078
    %v1217 = vpop.f32.mrb[0].mxu0
    %v1218 = vadd.f32 0.0, %v1217
    %v1219 = vpop.f32.mrb[0].mxu0
    %1220 = vdwg.mxu0
    %v1222 = vrot.slane %v1218, 3
    %v1223 = vrot.slane %v1218, 4
    %v1226 = vadd.f32 %v132, %v1222
    %v1227 = vadd.f32 %v137, %v1223
    %v1228 = vtanh.pop %v1226
    %v1229 = vtanh.pop %v1227
    %v1230 = vxor.u32 %v1226, 2147483648
    %v1231 = vxor.u32 %v1227, 2147483648
    %v1232 = vmul.f32 %v1230, 1.442695
    %v1233 = vpow.pop %v1232
    %v1234 = vmul.f32 %v1231, 1.442695
    %v1235 = vpow.pop %v1234
    %v1236 = vadd.f32 %v1233, 1.0
    %v1237 = vadd.f32 %v1235, 1.0
    %v1238 = vrcp.pop %v1236
    %v1239 = vmul.f32 1.0, %v1238
    %v1240 = vrcp.pop %v1237
    %v1241 = vmul.f32 1.0, %v1240
    %v1244 = vrot.slane %v1228, 5
    %v1245 = vrot.slane %v1229, 4
    %v1246 = vsel %vm246, %v1245, %v1244
    %v1250 = vrot.slane %v1239, 5
    %v1251 = vrot.slane %v1241, 4
    %v1252 = vsel %vm246, %v1251, %v1250
    %v1254 = vsel %vm148, %v1246, %v1252
    %v1255 = vmul.f32 %v1254, %v1064
    %1257 = vrot.lane.b32.xlu0 %v1254, 64
    %v1258 = vpop.permute.xlu0 %1257
    %v1260 = vmul.f32 %v1254, %v1258
    %1262 = vrot.lane.b32.xlu0 %v1260, 32
    %v1263 = vpop.permute.xlu0 %1262
    %v1265 = vadd.f32 %v1255, %v1263
    %v1266 = vtanh.pop %v1265
    %1268 = vrot.lane.b32.xlu0 %v1266, 64
    %v1269 = vpop.permute.xlu0 %1268
    %v1271 = vmul.f32 %v1254, %v1269
    %v1272 = vld [vmem:[%s4 + $0xa0] sm:$0xff]
    %v1273 = vld [vmem:[%s4 + $0xa8] sm:$0xff]
    %v1274 = vld [vmem:[%s4 + $0xb0] sm:$0xff]
    %v1275 = vld [vmem:[%s4 + $0xb8] sm:$0xff]
    %1277 = vrot.lane.b32.xlu0 %v1271, 32
    %v1278 = vpop.permute.xlu0 %1277
    %v1279 = vsel %vm149, %v1278, 0
    %1281 = vmatprep.subr.mxu0 0.0
    %1282 = vmatpush1.msra.mxu0 %v1272
    %1283 = vmatprep.subr.mxu0 0.0
    %1284 = vmatpush1.msra.mxu0 %v1273
    %1285 = vmatprep.subr.mxu0 0.0
    %1286 = vmatpush1.msra.mxu0 %v1274
    %1287 = vmatprep.subr.mxu0 0.0
    %1288 = vmatpush1.msra.mxu0 %v1275
    %1289 = vmatprep.subr.mxu0 0.0
    %1290 = vmatpush1.msra.mxu0 0.0
    %1291 = vmatprep.subr.mxu0 0.0
    %1292 = vmatpush1.msra.mxu0 0.0
    %1293 = vmatprep.subr.mxu0 0.0
    %1294 = vmatpush1.msra.mxu0 0.0
    %1295 = vmatprep.subr.mxu0 0.0
    %1296 = vmatpush1.msra.mxu0 0.0
    %1297 = vmatprep.subr.mxu0 0.0
    %1298 = vmatpush1.msra.mxu0 0.0
    %1299 = vmatprep.subr.mxu0 0.0
    %1300 = vmatpush1.msra.mxu0 0.0
    %1301 = vmatprep.subr.mxu0 0.0
    %1302 = vmatpush1.msra.mxu0 0.0
    %1303 = vmatprep.subr.mxu0 0.0
    %1304 = vmatpush1.msra.mxu0 0.0
    %1305 = vmatprep.subr.mxu0 0.0
    %1306 = vmatpush1.msra.mxu0 0.0
    %1307 = vmatprep.subr.mxu0 0.0
    %1308 = vmatpush1.msra.mxu0 0.0
    %1309 = vmatprep.subr.mxu0 0.0
    %1310 = vmatpush1.msra.mxu0 0.0
    %1311 = vmatprep.subr.mxu0 0.0
    %1312 = vmatpush1.msra.mxu0 0.0
    %1313 = vmatprep.subr.mxu0 0.0
    %1314 = vmatpush1.msra.mxu0 0.0
    %1315 = vmatprep.subr.mxu0 0.0
    %1316 = vmatpush1.msra.mxu0 0.0
    %1317 = vmatprep.subr.mxu0 0.0
    %1318 = vmatpush1.msra.mxu0 0.0
    %1319 = vmatprep.subr.mxu0 0.0
    %1320 = vmatpush1.msra.mxu0 0.0
    %1321 = vmatprep.subr.mxu0 0.0
    %1322 = vmatpush1.msra.mxu0 0.0
    %1323 = vmatprep.subr.mxu0 0.0
    %1324 = vmatpush1.msra.mxu0 0.0
    %1325 = vmatprep.subr.mxu0 0.0
    %1326 = vmatpush1.msra.mxu0 0.0
    %1327 = vmatprep.subr.mxu0 0.0
    %1328 = vmatpush1.msra.mxu0 0.0
    %1329 = vmatprep.subr.mxu0 0.0
    %1330 = vmatpush1.msra.mxu0 0.0
    %1331 = vmatprep.subr.mxu0 0.0
    %1332 = vmatpush1.msra.mxu0 0.0
    %1333 = vmatprep.subr.mxu0 0.0
    %1334 = vmatpush1.msra.mxu0 0.0
    %1335 = vmatprep.subr.mxu0 0.0
    %1336 = vmatpush1.msra.mxu0 0.0
    %1337 = vmatprep.subr.mxu0 0.0
    %1338 = vmatpush1.msra.mxu0 0.0
    %1339 = vmatprep.subr.mxu0 0.0
    %1340 = vmatpush1.msra.mxu0 0.0
    %1341 = vmatprep.subr.mxu0 0.0
    %1342 = vmatpush1.msra.mxu0 0.0
    %1343 = vmatprep.subr.mxu0 0.0
    %1344 = vmatpush1.msra.mxu0 0.0
    %1345 = vmatprep.mubr.f32.mxu0 0.0
    %1346 = vmatmul.mubr.f32.gmra.mrb[0].mxu0 %v1279
    %v1347 = vpop.f32.mrb[0].mxu0
    %v1348 = vadd.f32 0.0, %v1347
    %v1349 = vpop.f32.mrb[0].mxu0
    %1350 = vdwg.mxu0
    %v1351 = vadd.f32 %v1150, %v1348
    %1352 = vmatprep.subr.mxu0 0.0
    %1353 = vmatpush1.msra.mxu0 %v140
    %1354 = vmatprep.subr.mxu0 0.0
    %1355 = vmatpush1.msra.mxu0 %v141
    %1356 = vmatprep.subr.mxu0 0.0
    %1357 = vmatpush1.msra.mxu0 %v142
    %1358 = vmatprep.subr.mxu0 0.0
    %1359 = vmatpush1.msra.mxu0 %v143
    %1360 = vmatprep.subr.mxu0 0.0
    %1361 = vmatpush1.msra.mxu0 0.0
    %1362 = vmatprep.subr.mxu0 0.0
    %1363 = vmatpush1.msra.mxu0 0.0
    %1364 = vmatprep.subr.mxu0 0.0
    %1365 = vmatpush1.msra.mxu0 0.0
    %1366 = vmatprep.subr.mxu0 0.0
    %1367 = vmatpush1.msra.mxu0 0.0
    %1368 = vmatprep.subr.mxu0 0.0
    %1369 = vmatpush1.msra.mxu0 0.0
    %1370 = vmatprep.subr.mxu0 0.0
    %1371 = vmatpush1.msra.mxu0 0.0
    %1372 = vmatprep.subr.mxu0 0.0
    %1373 = vmatpush1.msra.mxu0 0.0
    %1374 = vmatprep.subr.mxu0 0.0
    %1375 = vmatpush1.msra.mxu0 0.0
    %1376 = vmatprep.subr.mxu0 0.0
    %1377 = vmatpush1.msra.mxu0 0.0
    %1378 = vmatprep.subr.mxu0 0.0
    %1379 = vmatpush1.msra.mxu0 0.0
    %1380 = vmatprep.subr.mxu0 0.0
    %1381 = vmatpush1.msra.mxu0 0.0
    %1382 = vmatprep.subr.mxu0 0.0
    %1383 = vmatpush1.msra.mxu0 0.0
    %1384 = vmatprep.subr.mxu0 0.0
    %1385 = vmatpush1.msra.mxu0 0.0
    %1386 = vmatprep.subr.mxu0 0.0
    %1387 = vmatpush1.msra.mxu0 0.0
    %1388 = vmatprep.subr.mxu0 0.0
    %1389 = vmatpush1.msra.mxu0 0.0
    %1390 = vmatprep.subr.mxu0 0.0
    %1391 = vmatpush1.msra.mxu0 0.0
    %1392 = vmatprep.subr.mxu0 0.0
    %1393 = vmatpush1.msra.mxu0 0.0
    %1394 = vmatprep.subr.mxu0 0.0
    %1395 = vmatpush1.msra.mxu0 0.0
    %1396 = vmatprep.subr.mxu0 0.0
    %1397 = vmatpush1.msra.mxu0 0.0
    %1398 = vmatprep.subr.mxu0 0.0
    %1399 = vmatpush1.msra.mxu0 0.0
    %1400 = vmatprep.subr.mxu0 0.0
    %1401 = vmatpush1.msra.mxu0 0.0
    %1402 = vmatprep.subr.mxu0 0.0
    %1403 = vmatpush1.msra.mxu0 0.0
    %1404 = vmatprep.subr.mxu0 0.0
    %1405 = vmatpush1.msra.mxu0 0.0
    %1406 = vmatprep.subr.mxu0 0.0
    %1407 = vmatpush1.msra.mxu0 0.0
    %1408 = vmatprep.subr.mxu0 0.0
    %1409 = vmatpush1.msra.mxu0 0.0
    %1410 = vmatprep.subr.mxu0 0.0
    %1411 = vmatpush1.msra.mxu0 0.0
    %1412 = vmatprep.subr.mxu0 0.0
    %1413 = vmatpush1.msra.mxu0 0.0
    %1414 = vmatprep.subr.mxu0 0.0
    %1415 = vmatpush1.msra.mxu0 0.0
    %1416 = vmatprep.mubr.f32.mxu0 0.0
    %1417 = vmatmul.mubr.f32.gmra.mrb[0].mxu0 %v1279
    %v1418 = vpop.f32.mrb[0].mxu0
    %v1419 = vadd.f32 0.0, %v1418
    %v1420 = vpop.f32.mrb[0].mxu0
    %1421 = vdwg.mxu0
    %v1423 = vrot.slane %v1419, 2
    %v1424 = vrot.slane %v1419, 3
    %v1427 = vadd.f32 %v132, %v1423
    %v1428 = vadd.f32 %v137, %v1424
    %v1429 = vtanh.pop %v1427
    %v1430 = vtanh.pop %v1428
    %v1431 = vxor.u32 %v1427, 2147483648
    %v1432 = vxor.u32 %v1428, 2147483648
    %v1433 = vmul.f32 %v1431, 1.442695
    %v1434 = vpow.pop %v1433
    %v1435 = vmul.f32 %v1432, 1.442695
    %v1436 = vpow.pop %v1435
    %v1437 = vadd.f32 %v1434, 1.0
    %v1438 = vadd.f32 %v1436, 1.0
    %v1439 = vrcp.pop %v1437
    %v1440 = vmul.f32 1.0, %v1439
    %v1441 = vrcp.pop %v1438
    %v1442 = vmul.f32 1.0, %v1441
    %v1445 = vrot.slane %v1429, 6
    %v1446 = vrot.slane %v1430, 5
    %v1447 = vsel %vm246, %v1446, %v1445
    %v1451 = vrot.slane %v1440, 6
    %v1452 = vrot.slane %v1442, 5
    %v1453 = vsel %vm246, %v1452, %v1451
    %v1455 = vsel %vm148, %v1447, %v1453
    %v1456 = vmul.f32 %v1455, %v1265
    %1458 = vrot.lane.b32.xlu0 %v1455, 64
    %v1459 = vpop.permute.xlu0 %1458
    %v1461 = vmul.f32 %v1455, %v1459
    %1463 = vrot.lane.b32.xlu0 %v1461, 32
    %v1464 = vpop.permute.xlu0 %1463
    %v1466 = vadd.f32 %v1456, %v1464
    %v1467 = vtanh.pop %v1466
    %1469 = vrot.lane.b32.xlu0 %v1467, 64
    %v1470 = vpop.permute.xlu0 %1469
    %v1472 = vmul.f32 %v1455, %v1470
    %v1473 = vld [vmem:[%s4 + $0xc0] sm:$0xff]
    %v1474 = vld [vmem:[%s4 + $0xc8] sm:$0xff]
    %v1475 = vld [vmem:[%s4 + $0xd0] sm:$0xff]
    %v1476 = vld [vmem:[%s4 + $0xd8] sm:$0xff]
    %1478 = vrot.lane.b32.xlu0 %v1472, 32
    %v1479 = vpop.permute.xlu0 %1478
    %v1480 = vsel %vm149, %v1479, 0
    %1482 = vmatprep.subr.mxu0 0.0
    %1483 = vmatpush1.msra.mxu0 %v1473
    %1484 = vmatprep.subr.mxu0 0.0
    %1485 = vmatpush1.msra.mxu0 %v1474
    %1486 = vmatprep.subr.mxu0 0.0
    %1487 = vmatpush1.msra.mxu0 %v1475
    %1488 = vmatprep.subr.mxu0 0.0
    %1489 = vmatpush1.msra.mxu0 %v1476
    %1490 = vmatprep.subr.mxu0 0.0
    %1491 = vmatpush1.msra.mxu0 0.0
    %1492 = vmatprep.subr.mxu0 0.0
    %1493 = vmatpush1.msra.mxu0 0.0
    %1494 = vmatprep.subr.mxu0 0.0
    %1495 = vmatpush1.msra.mxu0 0.0
    %1496 = vmatprep.subr.mxu0 0.0
    %1497 = vmatpush1.msra.mxu0 0.0
    %1498 = vmatprep.subr.mxu0 0.0
    %1499 = vmatpush1.msra.mxu0 0.0
    %1500 = vmatprep.subr.mxu0 0.0
    %1501 = vmatpush1.msra.mxu0 0.0
    %1502 = vmatprep.subr.mxu0 0.0
    %1503 = vmatpush1.msra.mxu0 0.0
    %1504 = vmatprep.subr.mxu0 0.0
    %1505 = vmatpush1.msra.mxu0 0.0
    %1506 = vmatprep.subr.mxu0 0.0
    %1507 = vmatpush1.msra.mxu0 0.0
    %1508 = vmatprep.subr.mxu0 0.0
    %1509 = vmatpush1.msra.mxu0 0.0
    %1510 = vmatprep.subr.mxu0 0.0
    %1511 = vmatpush1.msra.mxu0 0.0
    %1512 = vmatprep.subr.mxu0 0.0
    %1513 = vmatpush1.msra.mxu0 0.0
    %1514 = vmatprep.subr.mxu0 0.0
    %1515 = vmatpush1.msra.mxu0 0.0
    %1516 = vmatprep.subr.mxu0 0.0
    %1517 = vmatpush1.msra.mxu0 0.0
    %1518 = vmatprep.subr.mxu0 0.0
    %1519 = vmatpush1.msra.mxu0 0.0
    %1520 = vmatprep.subr.mxu0 0.0
    %1521 = vmatpush1.msra.mxu0 0.0
    %1522 = vmatprep.subr.mxu0 0.0
    %1523 = vmatpush1.msra.mxu0 0.0
    %1524 = vmatprep.subr.mxu0 0.0
    %1525 = vmatpush1.msra.mxu0 0.0
    %1526 = vmatprep.subr.mxu0 0.0
    %1527 = vmatpush1.msra.mxu0 0.0
    %1528 = vmatprep.subr.mxu0 0.0
    %1529 = vmatpush1.msra.mxu0 0.0
    %1530 = vmatprep.subr.mxu0 0.0
    %1531 = vmatpush1.msra.mxu0 0.0
    %1532 = vmatprep.subr.mxu0 0.0
    %1533 = vmatpush1.msra.mxu0 0.0
    %1534 = vmatprep.subr.mxu0 0.0
    %1535 = vmatpush1.msra.mxu0 0.0
    %1536 = vmatprep.subr.mxu0 0.0
    %1537 = vmatpush1.msra.mxu0 0.0
    %1538 = vmatprep.subr.mxu0 0.0
    %1539 = vmatpush1.msra.mxu0 0.0
    %1540 = vmatprep.subr.mxu0 0.0
    %1541 = vmatpush1.msra.mxu0 0.0
    %1542 = vmatprep.subr.mxu0 0.0
    %1543 = vmatpush1.msra.mxu0 0.0
    %1544 = vmatprep.subr.mxu0 0.0
    %1545 = vmatpush1.msra.mxu0 0.0
    %1546 = vmatprep.mubr.f32.mxu0 0.0
    %1547 = vmatmul.mubr.f32.gmra.mrb[0].mxu0 %v1480
    %v1548 = vpop.f32.mrb[0].mxu0
    %v1549 = vadd.f32 0.0, %v1548
    %v1550 = vpop.f32.mrb[0].mxu0
    %1551 = vdwg.mxu0
    %v1552 = vadd.f32 %v1351, %v1549
    %1553 = vmatprep.subr.mxu0 0.0
    %1554 = vmatpush1.msra.mxu0 %v140
    %1555 = vmatprep.subr.mxu0 0.0
    %1556 = vmatpush1.msra.mxu0 %v141
    %1557 = vmatprep.subr.mxu0 0.0
    %1558 = vmatpush1.msra.mxu0 %v142
    %1559 = vmatprep.subr.mxu0 0.0
    %1560 = vmatpush1.msra.mxu0 %v143
    %1561 = vmatprep.subr.mxu0 0.0
    %1562 = vmatpush1.msra.mxu0 0.0
    %1563 = vmatprep.subr.mxu0 0.0
    %1564 = vmatpush1.msra.mxu0 0.0
    %1565 = vmatprep.subr.mxu0 0.0
    %1566 = vmatpush1.msra.mxu0 0.0
    %1567 = vmatprep.subr.mxu0 0.0
    %1568 = vmatpush1.msra.mxu0 0.0
    %1569 = vmatprep.subr.mxu0 0.0
    %1570 = vmatpush1.msra.mxu0 0.0
    %1571 = vmatprep.subr.mxu0 0.0
    %1572 = vmatpush1.msra.mxu0 0.0
    %1573 = vmatprep.subr.mxu0 0.0
    %1574 = vmatpush1.msra.mxu0 0.0
    %1575 = vmatprep.subr.mxu0 0.0
    %1576 = vmatpush1.msra.mxu0 0.0
    %1577 = vmatprep.subr.mxu0 0.0
    %1578 = vmatpush1.msra.mxu0 0.0
    %1579 = vmatprep.subr.mxu0 0.0
    %1580 = vmatpush1.msra.mxu0 0.0
    %1581 = vmatprep.subr.mxu0 0.0
    %1582 = vmatpush1.msra.mxu0 0.0
    %1583 = vmatprep.subr.mxu0 0.0
    %1584 = vmatpush1.msra.mxu0 0.0
    %1585 = vmatprep.subr.mxu0 0.0
    %1586 = vmatpush1.msra.mxu0 0.0
    %1587 = vmatprep.subr.mxu0 0.0
    %1588 = vmatpush1.msra.mxu0 0.0
    %1589 = vmatprep.subr.mxu0 0.0
    %1590 = vmatpush1.msra.mxu0 0.0
    %1591 = vmatprep.subr.mxu0 0.0
    %1592 = vmatpush1.msra.mxu0 0.0
    %1593 = vmatprep.subr.mxu0 0.0
    %1594 = vmatpush1.msra.mxu0 0.0
    %1595 = vmatprep.subr.mxu0 0.0
    %1596 = vmatpush1.msra.mxu0 0.0
    %1597 = vmatprep.subr.mxu0 0.0
    %1598 = vmatpush1.msra.mxu0 0.0
    %1599 = vmatprep.subr.mxu0 0.0
    %1600 = vmatpush1.msra.mxu0 0.0
    %1601 = vmatprep.subr.mxu0 0.0
    %1602 = vmatpush1.msra.mxu0 0.0
    %1603 = vmatprep.subr.mxu0 0.0
    %1604 = vmatpush1.msra.mxu0 0.0
    %1605 = vmatprep.subr.mxu0 0.0
    %1606 = vmatpush1.msra.mxu0 0.0
    %1607 = vmatprep.subr.mxu0 0.0
    %1608 = vmatpush1.msra.mxu0 0.0
    %1609 = vmatprep.subr.mxu0 0.0
    %1610 = vmatpush1.msra.mxu0 0.0
    %1611 = vmatprep.subr.mxu0 0.0
    %1612 = vmatpush1.msra.mxu0 0.0
    %1613 = vmatprep.subr.mxu0 0.0
    %1614 = vmatpush1.msra.mxu0 0.0
    %1615 = vmatprep.subr.mxu0 0.0
    %1616 = vmatpush1.msra.mxu0 0.0
    %1617 = vmatprep.mubr.f32.mxu0 0.0
    %1618 = vmatmul.mubr.f32.gmra.mrb[0].mxu0 %v1480
    %v1619 = vpop.f32.mrb[0].mxu0
    %v1620 = vadd.f32 0.0, %v1619
    %v1621 = vpop.f32.mrb[0].mxu0
    %1622 = vdwg.mxu0
    %v1624 = vrot.slane %v1620, 1
    %v1625 = vrot.slane %v1620, 2
    %v1628 = vadd.f32 %v132, %v1624
    %v1629 = vadd.f32 %v137, %v1625
    %v1630 = vtanh.pop %v1628
    %v1631 = vtanh.pop %v1629
    %v1632 = vxor.u32 %v1628, 2147483648
    %v1633 = vxor.u32 %v1629, 2147483648
    %v1634 = vmul.f32 %v1632, 1.442695
    %v1635 = vpow.pop %v1634
    %v1636 = vmul.f32 %v1633, 1.442695
    %v1637 = vpow.pop %v1636
    %v1638 = vadd.f32 %v1635, 1.0
    %v1639 = vadd.f32 %v1637, 1.0
    %v1640 = vrcp.pop %v1638
    %v1641 = vmul.f32 1.0, %v1640
    %v1642 = vrcp.pop %v1639
    %v1643 = vmul.f32 1.0, %v1642
    %v1646 = vrot.slane %v1630, 7
    %v1647 = vrot.slane %v1631, 6
    %v1648 = vsel %vm246, %v1647, %v1646
    %v1652 = vrot.slane %v1641, 7
    %v1653 = vrot.slane %v1643, 6
    %v1654 = vsel %vm246, %v1653, %v1652
    %v1656 = vsel %vm148, %v1648, %v1654
    %v1657 = vmul.f32 %v1656, %v1466
    %1659 = vrot.lane.b32.xlu0 %v1656, 64
    %v1660 = vpop.permute.xlu0 %1659
    %v1662 = vmul.f32 %v1656, %v1660
    %1664 = vrot.lane.b32.xlu0 %v1662, 32
    %v1665 = vpop.permute.xlu0 %1664
    %v1667 = vadd.f32 %v1657, %v1665
    %v1668 = vtanh.pop %v1667
    %1670 = vrot.lane.b32.xlu0 %v1668, 64
    %v1671 = vpop.permute.xlu0 %1670
    %v1673 = vmul.f32 %v1656, %v1671
    %v1674 = vld [vmem:[%s4 + $0xe0] sm:$0xff]
    %v1675 = vld [vmem:[%s4 + $0xe8] sm:$0xff]
    %v1676 = vld [vmem:[%s4 + $0xf0] sm:$0xff]
    %v1677 = vld [vmem:[%s4 + $0xf8] sm:$0xff]
    %1679 = vrot.lane.b32.xlu0 %v1673, 32
    %v1680 = vpop.permute.xlu0 %1679
    %v1681 = vsel %vm149, %v1680, 0
    %1683 = vmatprep.subr.mxu0 0.0
    %1684 = vmatpush1.msra.mxu0 %v1674
    %1685 = vmatprep.subr.mxu0 0.0
    %1686 = vmatpush1.msra.mxu0 %v1675
    %1687 = vmatprep.subr.mxu0 0.0
    %1688 = vmatpush1.msra.mxu0 %v1676
    %1689 = vmatprep.subr.mxu0 0.0
    %1690 = vmatpush1.msra.mxu0 %v1677
    %1691 = vmatprep.subr.mxu0 0.0
    %1692 = vmatpush1.msra.mxu0 0.0
    %1693 = vmatprep.subr.mxu0 0.0
    %1694 = vmatpush1.msra.mxu0 0.0
    %1695 = vmatprep.subr.mxu0 0.0
    %1696 = vmatpush1.msra.mxu0 0.0
    %1697 = vmatprep.subr.mxu0 0.0
    %1698 = vmatpush1.msra.mxu0 0.0
    %1699 = vmatprep.subr.mxu0 0.0
    %1700 = vmatpush1.msra.mxu0 0.0
    %1701 = vmatprep.subr.mxu0 0.0
    %1702 = vmatpush1.msra.mxu0 0.0
    %1703 = vmatprep.subr.mxu0 0.0
    %1704 = vmatpush1.msra.mxu0 0.0
    %1705 = vmatprep.subr.mxu0 0.0
    %1706 = vmatpush1.msra.mxu0 0.0
    %1707 = vmatprep.subr.mxu0 0.0
    %1708 = vmatpush1.msra.mxu0 0.0
    %1709 = vmatprep.subr.mxu0 0.0
    %1710 = vmatpush1.msra.mxu0 0.0
    %1711 = vmatprep.subr.mxu0 0.0
    %1712 = vmatpush1.msra.mxu0 0.0
    %1713 = vmatprep.subr.mxu0 0.0
    %1714 = vmatpush1.msra.mxu0 0.0
    %1715 = vmatprep.subr.mxu0 0.0
    %1716 = vmatpush1.msra.mxu0 0.0
    %1717 = vmatprep.subr.mxu0 0.0
    %1718 = vmatpush1.msra.mxu0 0.0
    %1719 = vmatprep.subr.mxu0 0.0
    %1720 = vmatpush1.msra.mxu0 0.0
    %1721 = vmatprep.subr.mxu0 0.0
    %1722 = vmatpush1.msra.mxu0 0.0
    %1723 = vmatprep.subr.mxu0 0.0
    %1724 = vmatpush1.msra.mxu0 0.0
    %1725 = vmatprep.subr.mxu0 0.0
    %1726 = vmatpush1.msra.mxu0 0.0
    %1727 = vmatprep.subr.mxu0 0.0
    %1728 = vmatpush1.msra.mxu0 0.0
    %1729 = vmatprep.subr.mxu0 0.0
    %1730 = vmatpush1.msra.mxu0 0.0
    %1731 = vmatprep.subr.mxu0 0.0
    %1732 = vmatpush1.msra.mxu0 0.0
    %1733 = vmatprep.subr.mxu0 0.0
    %1734 = vmatpush1.msra.mxu0 0.0
    %1735 = vmatprep.subr.mxu0 0.0
    %1736 = vmatpush1.msra.mxu0 0.0
    %1737 = vmatprep.subr.mxu0 0.0
    %1738 = vmatpush1.msra.mxu0 0.0
    %1739 = vmatprep.subr.mxu0 0.0
    %1740 = vmatpush1.msra.mxu0 0.0
    %1741 = vmatprep.subr.mxu0 0.0
    %1742 = vmatpush1.msra.mxu0 0.0
    %1743 = vmatprep.subr.mxu0 0.0
    %1744 = vmatpush1.msra.mxu0 0.0
    %1745 = vmatprep.subr.mxu0 0.0
    %1746 = vmatpush1.msra.mxu0 0.0
    %1747 = vmatprep.mubr.f32.mxu0 0.0
    %1748 = vmatmul.mubr.f32.gmra.mrb[0].mxu0 %v1681
    %v1749 = vpop.f32.mrb[0].mxu0
    %v1750 = vadd.f32 0.0, %v1749
    %v1751 = vpop.f32.mrb[0].mxu0
    %1752 = vdwg.mxu0
    %v1753 = vadd.f32 %v1552, %v1750
    %v1754 = vld [vmem:[%s5] sm:$0x1]
    %v1756 = vlaneseq
    %v1757 = vshrl.u32 %v1756, 7
    %v1758 = vsub.s32 0, %v1757
    %v1759 = vrot.slane %v1754, %v1758
    %v1761 = vadd.f32 %v1753, %v1759
    %vm1762 = vcmask 517120
    %v1763 = vsel %vm1762, %v1761, 0.0
    %v1764 = vrot.slane %v1763, 4
    %v1765 = vadd.f32 %v1763, %v1764
    %v1766 = vrot.slane %v1765, 2
    %v1767 = vadd.f32 %v1765, %v1766
    %v1768 = vrot.slane %v1767, 1
    %v1769 = vadd.f32 %v1767, %v1768
    %v1770 = vrcp.pop 2.0
    %v1771 = vmul.f32 %v1769, %v1770
    %v1772 = vsub.f32 %v1761, %v1771
    %v1773 = vmul.f32 %v1772, %v1772
    %v1774 = vsel %vm1762, %v1773, 0.0
    %v1775 = vrot.slane %v1774, 4
    %v1776 = vadd.f32 %v1774, %v1775
    %v1777 = vrot.slane %v1776, 2
    %v1778 = vadd.f32 %v1776, %v1777
    %v1779 = vrot.slane %v1778, 1
    %v1780 = vadd.f32 %v1778, %v1779
    %v1781 = vmul.f32 %v1780, %v1770
    %v1782 = vadd.f32 %v1781, 1e-05
    %v1783 = vrsqrt.pop %v1782
    %v1784 = vmul.f32 %v1772, %v1783
    %v1785 = vld [vmem:[%s6] sm:$0x1]
    %v1787 = vlaneseq
    %v1788 = vshrl.u32 %v1787, 7
    %v1789 = vsub.s32 0, %v1788
    %v1790 = vrot.slane %v1785, %v1789
    %v1792 = vmul.f32 %v1784, %v1790
    %v1793 = vld [vmem:[%s7] sm:$0x1]
    %v1795 = vlaneseq
    %v1796 = vshrl.u32 %v1795, 7
    %v1797 = vsub.s32 0, %v1796
    %v1798 = vrot.slane %v1793, %v1797
    %v1800 = vadd.f32 %v1792, %v1798
    %v1801 = vmax.f32 %v1800, 0.0
    %v1802 = vld [vmem:[%s8] sm:$0xff]
    %v1803 = vld [vmem:[%s8 + $0x8] sm:$0xff]
    %v1804 = vld [vmem:[%s8 + $0x10] sm:$0xff]
    %v1805 = vld [vmem:[%s8 + $0x18] sm:$0xff]
    %v1806 = vld [vmem:[%s8 + $0x20] sm:$0xff]
    %v1807 = vld [vmem:[%s8 + $0x28] sm:$0xff]
    %v1808 = vld [vmem:[%s8 + $0x30] sm:$0xff]
    %v1809 = vld [vmem:[%s8 + $0x38] sm:$0xff]
    %v1810 = vld [vmem:[%s9] sm:$0x1]
    %v1812 = vlaneseq
    %v1813 = vshrl.u32 %v1812, 7
    %v1814 = vsub.s32 0, %v1813
    %v1815 = vrot.slane %v1810, %v1814
    %vm1817 = vcmask 523264
    %v1819 = vsel %vm1817, %v1801, 0
    %1821 = vmatprep.subr.mxu0 0.0
    %1822 = vmatpush1.msra.mxu0 %v1802
    %1823 = vmatprep.subr.mxu0 0.0
    %1824 = vmatpush1.msra.mxu0 %v1803
    %1825 = vmatprep.subr.mxu0 0.0
    %1826 = vmatpush1.msra.mxu0 %v1804
    %1827 = vmatprep.subr.mxu0 0.0
    %1828 = vmatpush1.msra.mxu0 %v1805
    %1829 = vmatprep.subr.mxu0 0.0
    %1830 = vmatpush1.msra.mxu0 %v1806
    %1831 = vmatprep.subr.mxu0 0.0
    %1832 = vmatpush1.msra.mxu0 %v1807
    %1833 = vmatprep.subr.mxu0 0.0
    %1834 = vmatpush1.msra.mxu0 %v1808
    %1835 = vmatprep.subr.mxu0 0.0
    %1836 = vmatpush1.msra.mxu0 %v1809
    %1837 = vmatprep.subr.mxu0 0.0
    %1838 = vmatpush1.msra.mxu0 0.0
    %1839 = vmatprep.subr.mxu0 0.0
    %1840 = vmatpush1.msra.mxu0 0.0
    %1841 = vmatprep.subr.mxu0 0.0
    %1842 = vmatpush1.msra.mxu0 0.0
    %1843 = vmatprep.subr.mxu0 0.0
    %1844 = vmatpush1.msra.mxu0 0.0
    %1845 = vmatprep.subr.mxu0 0.0
    %1846 = vmatpush1.msra.mxu0 0.0
    %1847 = vmatprep.subr.mxu0 0.0
    %1848 = vmatpush1.msra.mxu0 0.0
    %1849 = vmatprep.subr.mxu0 0.0
    %1850 = vmatpush1.msra.mxu0 0.0
    %1851 = vmatprep.subr.mxu0 0.0
    %1852 = vmatpush1.msra.mxu0 0.0
    %1853 = vmatprep.subr.mxu0 0.0
    %1854 = vmatpush1.msra.mxu0 0.0
    %1855 = vmatprep.subr.mxu0 0.0
    %1856 = vmatpush1.msra.mxu0 0.0
    %1857 = vmatprep.subr.mxu0 0.0
    %1858 = vmatpush1.msra.mxu0 0.0
    %1859 = vmatprep.subr.mxu0 0.0
    %1860 = vmatpush1.msra.mxu0 0.0
    %1861 = vmatprep.subr.mxu0 0.0
    %1862 = vmatpush1.msra.mxu0 0.0
    %1863 = vmatprep.subr.mxu0 0.0
    %1864 = vmatpush1.msra.mxu0 0.0
    %1865 = vmatprep.subr.mxu0 0.0
    %1866 = vmatpush1.msra.mxu0 0.0
    %1867 = vmatprep.subr.mxu0 0.0
    %1868 = vmatpush1.msra.mxu0 0.0
    %1869 = vmatprep.subr.mxu0 0.0
    %1870 = vmatpush1.msra.mxu0 0.0
    %1871 = vmatprep.subr.mxu0 0.0
    %1872 = vmatpush1.msra.mxu0 0.0
    %1873 = vmatprep.subr.mxu0 0.0
    %1874 = vmatpush1.msra.mxu0 0.0
    %1875 = vmatprep.subr.mxu0 0.0
    %1876 = vmatpush1.msra.mxu0 0.0
    %1877 = vmatprep.subr.mxu0 0.0
    %1878 = vmatpush1.msra.mxu0 0.0
    %1879 = vmatprep.subr.mxu0 0.0
    %1880 = vmatpush1.msra.mxu0 0.0
    %1881 = vmatprep.subr.mxu0 0.0
    %1882 = vmatpush1.msra.mxu0 0.0
    %1883 = vmatprep.subr.mxu0 0.0
    %1884 = vmatpush1.msra.mxu0 0.0
    %1885 = vmatprep.mubr.f32.mxu0 0.0
    %1886 = vmatmul.mubr.f32.gmra.mrb[0].mxu0 %v1819
    %v1887 = vpop.f32.mrb[0].mxu0
    %v1888 = vadd.f32 %v1815, %v1887
    %v1889 = vpop.f32.mrb[0].mxu0
    %1890 = vdwg.mxu0
    %vm1891 = vcmask 25600
    %1892 = vst.msk [vmem:[#allocation2] sm:$0x3] %vm1891, %v1888
    // Predicated region
    $region42: #{tpu_custom_call.1} parent=1 // pred_check
      _
    $region43: #{tpu_custom_call.1} parent=1 // pred_check_branch
      %1894 = sbr.rel (0) target = $region45
    $region44: #{tpu_custom_call.1} parent=1 // pred_region
      %s1896 = ssub.s32 32, 32
      %1897 = vsyncadd [#allocation3], %s1896
      %s1899 = sshll.u32 [#allocation2], 4
      %s1900 = int_to_ptr.vmem [resolvable:$true] %s1899
      %1902 = dma.vmem_to_hbm [thread:$0]  %s1900, 32, %s10, [#allocation3]
    $region45: #{tpu_custom_call.1} parent=1 // pred_fallthru
      _
    // Predicated region
    $region46: #{tpu_custom_call.1} parent=1 // pred_check
      _
    $region47: #{tpu_custom_call.1} parent=1 // pred_check_branch
      %1904 = sbr.rel (0) target = $region49
    $region48: #{tpu_custom_call.1} parent=1 // pred_region
      %1905 = dma.done [#allocation3], 32
    $region49: #{tpu_custom_call.1} parent=1 // pred_fallthru
      _
    %1906 = vsyncpa [#allocation3], 1

</llo_original>
